<compile_context>
chip_gen: v5e
topology: v5e:2x2
jax: 0.10.0
libtpu: 0.0.40
codegen_flags: <defaults>
</compile_context>

<pallas_src>
import functools

import jax
import jax.numpy as jnp
from jax import lax
from jax.experimental import pallas as pl
from jax.experimental.pallas import tpu as pltpu

F32 = jnp.float32
BF16 = jnp.bfloat16


def _detect_vmem_budget():
    cap = 64 * 1024 * 1024                 # conservative default (v7x per-core VMEM)
    try:
        info = pltpu.get_tpu_info()
        cap = int(getattr(info, "vmem_capacity_bytes", cap) or cap)
    except Exception:
        pass
    # leave headroom for Mosaic internal scratch / pipelining slop
    return int(cap * 3 // 4)               # ~96 MiB on v5e/v6e, ~48 MiB on v7x


VMEM_BUDGET = _detect_vmem_budget()


def _sigmoid(x):
    # exact identity, single (stable) EUP tanh instead of exp + divide
    return 0.5 * (jnp.tanh(0.5 * x) + 1.0)


def _softplus(x):
    # numerically stable softplus
    return jnp.maximum(x, 0.0) + jnp.log(1.0 + jnp.exp(-jnp.abs(x)))


def _choose_block(total, per_unit, fixed, budget, align=1):
    """Largest divisor c of `total` with fixed + per_unit*c <= budget, honoring the (8,128)
    tiling rule via `align` (c % align == 0 or c == total).  Falls back to the smallest
    admissible divisor if nothing fits the budget."""
    fallback = total
    for c in range(total, 0, -1):
        if total % c:
            continue
        if align > 1 and c % align != 0 and c != total:
            continue
        fallback = c
        if fixed + per_unit * c <= budget:
            return c
    return fallback


def _batch_chunks(b):
    # TODO(synk): with nb == 1 the serial LSTM recurrence runs on a single TensorCore; on v7x
    # (2 TCs/chip) the second core idles through this stage for small batches.
    if b >= 16 and b % 2 == 0 and (b // 2) % 8 == 0:
        return 2
    return 1


# ----------------------------- Pallas kernels ---------------------------------

def _basin_gat_kernel(era5_ref, cs_ref, dsb_ref, bias_ref, we_ref, mc_ref,
                      gw_ref, gas_ref, gad_ref, gb_ref, out_ref, *, n_layers):
    n, tb, fe = era5_ref.shape
    d = mc_ref.shape[1]

    # basin DualProjection, batched over the whole time block (node-major [N*Tb, .] GEMMs);
    # time-invariant terms (cs/dsb) were precomputed outside the kernel.
    e2 = era5_ref[...].reshape(n * tb, fe)
    hc = jnp.tanh(jnp.dot(e2.astype(BF16), we_ref[...],
                          preferred_element_type=F32).reshape(n, tb, d)
                  + cs_ref[...][:, None, :])
    x = jnp.tanh(jnp.dot(hc.reshape(n * tb, d).astype(BF16), mc_ref[...],
                         preferred_element_type=F32).reshape(n, tb, d)
                 + dsb_ref[...][:, None, :])
    # switch to time-major for the per-timestep graph attention
    x = jnp.transpose(x, (1, 0, 2))                                           # [Tb, N, D]

    bias = bias_ref[...]                                                      # [N, N] 0/-1e30

    for li in range(n_layers):
        # node projection for all Tb timesteps in one GEMM
        h = jnp.dot(x.reshape(tb * n, d).astype(BF16), gw_ref[li],
                    preferred_element_type=F32).reshape(tb, n, d)             # [Tb, N, D]
        a_s = jnp.sum(h * gas_ref[li][None], axis=-1)                         # [Tb, N]
        a_d = jnp.sum(h * gad_ref[li][None], axis=-1)                         # [Tb, N]
        e = a_d[:, :, None] + a_s[:, None, :]                                 # e[t,i,j]=dst_i+src_j
        e = jnp.where(e > 0, e, 0.2 * e) + bias[None]                         # LeakyReLU + mask bias
        e = e - jnp.max(e, axis=-1, keepdims=True)
        p = jnp.exp(e)
        attn = p * pl.reciprocal(jnp.sum(p, axis=-1, keepdims=True), approx=True)
        # bf16 x bf16 MXU aggregation, f32 accumulation
        out = jnp.einsum('tij,tjd->tid', attn.astype(BF16), h.astype(BF16),
                         preferred_element_type=F32) + gb_ref[li][None]
        if li < n_layers - 1:                                                 # ReLU between layers
            out = jnp.maximum(out, 0.0)
        x = out
    out_ref[...] = x


def _river_xg_kernel(s_ref, cs_ref, dsb_ref, ws_ref, mc_ref, wih_ref, bih_ref, xg_ref):
    tb, b, d = s_ref.shape
    dp = mc_ref.shape[1]
    h4 = wih_ref.shape[1]

    s2 = s_ref[...].reshape(tb * b, d)
    hc = jnp.tanh(jnp.dot(s2.astype(BF16), ws_ref[...],
                          preferred_element_type=F32).reshape(tb, b, dp)
                  + cs_ref[...][None])
    series = jnp.tanh(jnp.dot(hc.reshape(tb * b, dp).astype(BF16), mc_ref[...],
                              preferred_element_type=F32).reshape(tb, b, dp)
                      + dsb_ref[...][None])                                   # [Tb, B, Dp]

    # LSTM input projection hoisted off the serial path (one big GEMM, bias folded in)
    xg = jnp.dot(series.reshape(tb * b, dp).astype(BF16), wih_ref[...],
                 preferred_element_type=F32) + bih_ref[...]                   # [Tb*B, 4H]
    xg_ref[...] = xg.reshape(tb, b, h4)


def _lstm_block_kernel(xg_ref, whh_ref, h0_ref, c0_ref,
                       y_ref, hT_ref, cT_ref, h_scr, c_scr):
    tblk = pl.program_id(1)

    @pl.when(tblk == 0)
    def _():
        h_scr[...] = h0_ref[...]
        c_scr[...] = c0_ref[...]

    tb = y_ref.shape[0]
    hdim = h_scr.shape[-1]
    whh = whh_ref[...]                                                        # resident [H, 4H]

    def step(t, carry):
        h, c = carry
        # TODO(synk): sub-128-lane gate slices (hdim < 128) force per-step relayouts; pad the
        # gate groups of Whh to 128 columns for production hidden sizes below 128.
        gates = xg_ref[t] + jnp.dot(h.astype(BF16), whh, preferred_element_type=F32)
        i = _sigmoid(gates[:, 0:hdim])
        f = _sigmoid(gates[:, hdim:2 * hdim])
        g = jnp.tanh(gates[:, 2 * hdim:3 * hdim])
        o = _sigmoid(gates[:, 3 * hdim:4 * hdim])
        c = f * c + i * g
        h = o * jnp.tanh(c)
        y_ref[t] = h                                                          # block store, flushed once per grid step
        return h, c

    h, c = lax.fori_loop(0, tb, step, (h_scr[...], c_scr[...]), unroll=(tb <= 8))
    h_scr[...] = h
    c_scr[...] = c

    @pl.when(tblk == pl.num_programs(1) - 1)
    def _():
        hT_ref[...] = h
        cT_ref[...] = c


def _cmal_kernel(y_ref, w1_ref, b1_ref, wo_ref, bo_ref, z_ref, *, mix, mp):
    # TODO(synk): CMAL head source not provided; canonical CMAL parameterization assumed.
    h = jnp.tanh(jnp.dot(y_ref[...].astype(BF16), w1_ref[...],
                         preferred_element_type=F32) + b1_ref[...])
    # four heads fused into a single 128-lane-padded matmul -> lane-dense output block
    z = jnp.dot(h.astype(BF16), wo_ref[...], preferred_element_type=F32) + bo_ref[...]
    rt = z.shape[0]

    mu = z[:, 0:mp]
    scale = _softplus(z[:, mp:2 * mp]) + 1e-5
    tau = (1.0 - 2e-5) * _sigmoid(z[:, 2 * mp:3 * mp]) + 1e-5
    logits = z[:, 3 * mp:4 * mp]
    col = lax.broadcasted_iota(jnp.int32, (rt, mp), 1)
    logits = jnp.where(col < mix, logits, -1e30)                              # mask pad columns
    logits = logits - jnp.max(logits, axis=-1, keepdims=True)
    e = jnp.exp(logits)
    pi = e * pl.reciprocal(jnp.sum(e, axis=-1, keepdims=True), approx=True)

    z_ref[:, 0:mp] = mu
    z_ref[:, mp:2 * mp] = scale
    z_ref[:, 2 * mp:3 * mp] = tau
    z_ref[:, 3 * mp:4 * mp] = pi


# ----------------------------- kernel wrappers ---------------------------------

def basin_gat_forward(params, era5_ntf, bc, bd, adj_bias):
    n, t_steps, fe = era5_ntf.shape
    proj = params["basinProjection"]
    gat = params["gat"]
    d = proj["merge_b"].shape[-1]
    n_layers = len(gat)

    # time-invariant DualProjection terms: computed once (plain JAX), never per time block
    # TODO(synk): assumes [dynamic, static] concat order in the original DualProjection.
    cont_static = bc @ proj["cont"]["w"][fe:] + proj["cont"]["b"]             # [N, D]
    hdv = jnp.tanh(bd @ proj["disc"]["w"] + proj["disc"]["b"])
    disc_static = hdv @ proj["merge_d"] + proj["merge_b"]                     # [N, D]

    we = proj["cont"]["w"][:fe].astype(BF16)
    mc = proj["merge_c"].astype(BF16)
    gw = jnp.stack([l["w"] for l in gat]).astype(BF16)                        # [L, D, D]
    gas = jnp.stack([l["a_src"] for l in gat])                                # [L, 1, D]
    gad = jnp.stack([l["a_dst"] for l in gat])
    gb = jnp.stack([l["bias"] for l in gat])

    # VMEM-budget-driven time block (era5/out blocks double-buffered + [Tb,N,N] softmax temps)
    per_t = 4 * (2 * n * fe + 6 * n * d + 3 * n * n)
    fixed = 2 * (4 * n * n + 8 * n * d
                 + 2 * (fe * d + d * d + n_layers * d * d) + 12 * n_layers * d)
    tb = _choose_block(t_steps, per_t, fixed, VMEM_BUDGET, align=8)

    full = lambda shape: pl.BlockSpec(shape, lambda t: (0,) * len(shape))
    return pl.pallas_call(
        functools.partial(_basin_gat_kernel, n_layers=n_layers),
        out_shape=jax.ShapeDtypeStruct((t_steps, n, d), F32),
        grid=(t_steps // tb,),
        in_specs=[pl.BlockSpec((n, tb, fe), lambda t: (0, t, 0)),             # native [N,T,Fe], no host transpose
                  full((n, d)), full((n, d)), full((n, n)),
                  full((fe, d)), full((d, d)),
                  full((n_layers, d, d)), full((n_layers, 1, d)),
                  full((n_layers, 1, d)), full((n_layers, 1, d))],
        out_specs=pl.BlockSpec((tb, n, d), lambda t: (t, 0, 0)),
        compiler_params=pltpu.CompilerParams(
            dimension_semantics=("parallel",), vmem_limit_bytes=VMEM_BUDGET),
    )(era5_ntf, cont_static, disc_static, adj_bias, we, mc, gw, gas, gad, gb)


def river_xgates_forward(params, sampled_tbd, rc, rd, lstm):
    t_steps, b, d = sampled_tbd.shape
    proj = params["riverProjection"]
    dp = proj["merge_b"].shape[-1]
    h4 = lstm["wih"].shape[1]

    cont_static = rc @ proj["cont"]["w"][d:] + proj["cont"]["b"]              # [B, Dp]
    hdv = jnp.tanh(rd @ proj["disc"]["w"] + proj["disc"]["b"])
    disc_static = hdv @ proj["merge_d"] + proj["merge_b"]                     # [B, Dp]

    ws = proj["cont"]["w"][:d].astype(BF16)
    mc = proj["merge_c"].astype(BF16)
    wih = lstm["wih"].astype(BF16)
    bih = lstm["b"]

    per_t = 4 * (2 * b * d + 2 * b * h4 + 3 * b * dp)
    fixed = 2 * (8 * b * dp + 2 * (d * dp + dp * dp + dp * h4) + 4 * h4)
    tb = _choose_block(t_steps, per_t, fixed, VMEM_BUDGET, align=1)

    full = lambda shape: pl.BlockSpec(shape, lambda t: (0,) * len(shape))
    return pl.pallas_call(
        _river_xg_kernel,
        out_shape=jax.ShapeDtypeStruct((t_steps, b, h4), F32),
        grid=(t_steps // tb,),
        in_specs=[pl.BlockSpec((tb, b, d), lambda t: (t, 0, 0)),
                  full((b, dp)), full((b, dp)),
                  full((d, dp)), full((dp, dp)),
                  full((dp, h4)), full((1, h4))],
        out_specs=pl.BlockSpec((tb, b, h4), lambda t: (t, 0, 0)),
        compiler_params=pltpu.CompilerParams(
            dimension_semantics=("parallel",), vmem_limit_bytes=VMEM_BUDGET),
    )(sampled_tbd, cont_static, disc_static, ws, mc, wih, bih)


def lstm_recurrence(xg_tbh4, whh, h0, c0):
    # TODO(synk): only num_layers == 1 is implemented (config lstmLayers=1).
    t_steps, b, h4 = xg_tbh4.shape
    hdim = h4 // 4
    nb = _batch_chunks(b)
    bb = b // nb

    per_t = 4 * (2 * bb * h4 + 2 * bb * hdim)
    fixed = 2 * (2 * hdim * h4) + 24 * bb * hdim
    tb = _choose_block(t_steps, per_t, fixed, VMEM_BUDGET, align=1)

    y, h_t, c_t = pl.pallas_call(
        _lstm_block_kernel,
        out_shape=(jax.ShapeDtypeStruct((t_steps, b, hdim), F32),
                   jax.ShapeDtypeStruct((b, hdim), F32),
                   jax.ShapeDtypeStruct((b, hdim), F32)),
        grid=(nb, t_steps // tb),
        in_specs=[pl.BlockSpec((tb, bb, h4), lambda bi, t: (t, bi, 0)),
                  pl.BlockSpec((hdim, h4), lambda bi, t: (0, 0)),
                  pl.BlockSpec((bb, hdim), lambda bi, t: (bi, 0)),
                  pl.BlockSpec((bb, hdim), lambda bi, t: (bi, 0))],
        out_specs=(pl.BlockSpec((tb, bb, hdim), lambda bi, t: (t, bi, 0)),
                   pl.BlockSpec((bb, hdim), lambda bi, t: (bi, 0)),
                   pl.BlockSpec((bb, hdim), lambda bi, t: (bi, 0))),
        scratch_shapes=[pltpu.VMEM((bb, hdim), F32), pltpu.VMEM((bb, hdim), F32)],
        compiler_params=pltpu.CompilerParams(
            dimension_semantics=("parallel", "arbitrary"),
            vmem_limit_bytes=VMEM_BUDGET),
    )(xg_tbh4, whh.astype(BF16), h0, c0)
    return y, h_t, c_t                                                        # y is [T, B, H]


def cmal_head_forward(y_rows, head):
    rows, h = y_rows.shape
    mix = head["mu"]["w"].shape[1]
    hd = head["l1"]["w"].shape[1]
    mp = max(128, ((mix + 127) // 128) * 128)                                 # 128-lane-aligned group

    w1 = head["l1"]["w"].astype(BF16)
    b1 = head["l1"]["b"]
    wo = jnp.zeros((hd, 4 * mp), F32)
    bo = jnp.zeros((1, 4 * mp), F32)
    for g, name in enumerate(("mu", "b", "tau", "pi")):
        wo = wo.at[:, g * mp:g * mp + mix].set(head[name]["w"])
        bo = bo.at[:, g * mp:g * mp + mix].set(head[name]["b"])
    wo = wo.astype(BF16)

    per_row = 4 * (2 * h + 3 * 4 * mp + hd)
    fixed = 2 * (2 * (h * hd + hd * 4 * mp) + 4 * (hd + 4 * mp))
    rt = _choose_block(rows, per_row, fixed, VMEM_BUDGET, align=8)

    full = lambda shape: pl.BlockSpec(shape, lambda r: (0,) * len(shape))
    z = pl.pallas_call(
        functools.partial(_cmal_kernel, mix=mix, mp=mp),
        out_shape=jax.ShapeDtypeStruct((rows, 4 * mp), F32),
        grid=(rows // rt,),
        in_specs=[pl.BlockSpec((rt, h), lambda r: (r, 0)),
                  full((h, hd)), full((1, hd)),
                  full((hd, 4 * mp)), full((1, 4 * mp))],
        out_specs=pl.BlockSpec((rt, 4 * mp), lambda r: (r, 0)),
        compiler_params=pltpu.CompilerParams(
            dimension_semantics=("parallel",), vmem_limit_bytes=VMEM_BUDGET),
    )(y_rows, w1, b1, wo, bo)
    return z, mix, mp


def bridge_forward(hidden_p, cell_p, hidden, cell):
    # tiny [B,H]x[H,H] GEMM pair: cheaper as plain XLA ops than a dedicated pallas_call launch
    h = jnp.tanh(hidden @ hidden_p["w"] + hidden_p["b"])
    c = cell @ cell_p["w"] + cell_p["b"]
    return h, c


# ----------------------------- model forward ----------------------------------

def coder_forward(params, inputs, state=None):
    era5 = inputs["era5"]                                                     # [N, T, Fe]
    n_nodes, t_steps, _ = era5.shape

    # additive attention mask bias from adjacency (+ self-loops), computed once
    adj_bias = jnp.where(inputs["adj"] > 0.0, 0.0, -1e30).astype(F32)

    # stage 1: basin projection + GAT stack (fused), output [T, N, D]
    att_t = basin_gat_forward(params, era5, inputs["basinContinuous"],
                              inputs["basinDiscrete"], adj_bias)

    # gather one node per basin (plain JAX gather)
    # TODO(synk): could be fused into the river kernel via scalar-prefetch row gather.
    sampled_t = att_t[:, inputs["batchIndices"], :]                           # [T, B, D]
    b = sampled_t.shape[1]

    # stage 2: river projection + LSTM input projection (fused), output [T, B, 4H]
    xg = river_xgates_forward(params, sampled_t, inputs["riverContinuous"],
                              inputs["riverDiscrete"], params["lstm"])

    hdim = params["lstm"]["whh"].shape[0]
    if state is None:
        h0 = jnp.zeros((b, hdim), F32)
        c0 = jnp.zeros((b, hdim), F32)
    else:
        h0, c0 = state

    # stage 3: LSTM recurrence (in-kernel time loop; only h @ Whh on the serial path)
    y_tbh, h_t, c_t = lstm_recurrence(xg, params["lstm"]["whh"], h0, c0)      # y [T, B, H]

    # stage 4: CMAL head (fused, lane-dense 4*128-padded output), split outside
    z, mix, mp = cmal_head_forward(y_tbh.reshape(t_steps * b, hdim), params["head"])
    z = z.reshape(t_steps, b, 4 * mp).transpose(1, 0, 2)                      # [B, T, 4*mp]
    cast = (z[..., 0:mix], z[..., mp:mp + mix],
            z[..., 2 * mp:2 * mp + mix], z[..., 3 * mp:3 * mp + mix])
    return cast, (h_t, c_t)


def station_forward(params, past, future, future_steps):
    cast, (hidden, cell) = coder_forward(params["encoder"], past)
    hindcast = [s[:, -1:, :] for s in cast]
    if future_steps == 0:
        return hindcast, None
    hidden, cell = bridge_forward(params["hiddenBridge"], params["cellBridge"],
                                  hidden, cell)
    forecast, _ = coder_forward(params["decoder"], future, (hidden, cell))
    return hindcast, forecast


# ----------------------------- parameter init ---------------------------------

def init_linear(key, din, dout):
    kw, kb = jax.random.split(key)
    return {"w": 0.1 * jax.random.normal(kw, (din, dout), F32),
            "b": 0.1 * jax.random.normal(kb, (1, dout), F32)}


def init_dual_projection(key, cont_in, disc_in, disc_dim, out_dim):
    # TODO(synk): DualProjection definition not provided; dual linear+tanh branches merged by a
    # split linear (equivalent to concat+linear) then tanh.
    k1, k2, k3, k4, k5 = jax.random.split(key, 5)
    return {"cont": init_linear(k1, cont_in, out_dim),
            "disc": init_linear(k2, disc_in, disc_dim),
            "merge_c": 0.1 * jax.random.normal(k3, (out_dim, out_dim), F32),
            "merge_d": 0.1 * jax.random.normal(k4, (disc_dim, out_dim), F32),
            "merge_b": 0.1 * jax.random.normal(k5, (1, out_dim), F32)}


def init_gat_layer(key, din, dout):
    k1, k2, k3, k4 = jax.random.split(key, 4)
    return {"w": 0.1 * jax.random.normal(k1, (din, dout), F32),
            "a_src": 0.1 * jax.random.normal(k2, (1, dout), F32),
            "a_dst": 0.1 * jax.random.normal(k3, (1, dout), F32),
            "bias": 0.1 * jax.random.normal(k4, (1, dout), F32)}


def init_lstm(key, din, hid):
    k1, k2, k3 = jax.random.split(key, 3)
    return {"wih": 0.1 * jax.random.normal(k1, (din, 4 * hid), F32),
            "whh": 0.1 * jax.random.normal(k2, (hid, 4 * hid), F32),
            "b": 0.1 * jax.random.normal(k3, (1, 4 * hid), F32)}


def init_cmal(key, din, hid, mix):
    k1, k2, k3, k4, k5 = jax.random.split(key, 5)
    return {"l1": init_linear(k1, din, hid),
            "mu": init_linear(k2, hid, mix),
            "b": init_linear(k3, hid, mix),
            "tau": init_linear(k4, hid, mix),
            "pi": init_linear(k5, hid, mix)}


def init_coder(key, era5_dim, bc_dim, bd_dim, rc_dim, rd_dim,
               disc_dim, gat_dim, gat_layers, lstm_dim, head_dim, mix):
    keys = jax.random.split(key, 4 + gat_layers)
    return {
        "basinProjection": init_dual_projection(keys[0], era5_dim + bc_dim, bd_dim, disc_dim, gat_dim),
        "gat": [init_gat_layer(keys[1 + i], gat_dim, gat_dim) for i in range(gat_layers)],
        "riverProjection": init_dual_projection(keys[1 + gat_layers], gat_dim + rc_dim, rd_dim,
                                                disc_dim, gat_dim),
        "lstm": init_lstm(keys[2 + gat_layers], gat_dim, lstm_dim),
        "head": init_cmal(keys[3 + gat_layers], lstm_dim, head_dim, mix),
    }


def make_inputs(key, n_nodes, t_steps, era5_dim, bc_dim, bd_dim, rc_dim, rd_dim,
                batch, nodes, edge_index):
    ks = jax.random.split(key, 5)
    src, dst = edge_index
    adj = jnp.zeros((n_nodes, n_nodes), F32).at[dst, src].set(1.0)
    adj = jnp.maximum(adj, jnp.eye(n_nodes, dtype=F32))                       # GATConv self-loops
    batch_indices = jnp.concatenate([jnp.zeros((1,), jnp.int32),
                                     jnp.cumsum(nodes)[:-1].astype(jnp.int32)])
    return {"era5": jax.random.normal(ks[0], (n_nodes, t_steps, era5_dim), F32),
            "basinContinuous": jax.random.normal(ks[1], (n_nodes, bc_dim), F32),
            "basinDiscrete": jax.random.normal(ks[2], (n_nodes, bd_dim), F32),
            "riverContinuous": jax.random.normal(ks[3], (batch, rc_dim), F32),
            "riverDiscrete": jax.random.normal(ks[4], (batch, rd_dim), F32),
            "adj": adj,
            "batchIndices": batch_indices}


if __name__ == "__main__":
    B = 2
    NODES_PER = 4
    N = B * NODES_PER
    T_PAST, T_FUT = 8, 4
    ERA5, BASIN_C, BASIN_D, RIVER_C, RIVER_D = 6, 5, 3, 5, 3
    DISC_DIM, GAT_DIM, LSTM_DIM, HEAD_DIM, MIX = 8, 32, 32, 32, 3
    GAT_LAYERS = 2

    root = jax.random.PRNGKey(0)
    k_enc, k_dec, k_bh, k_bc, k_past, k_fut = jax.random.split(root, 6)

    params = {
        "encoder": init_coder(k_enc, ERA5, BASIN_C, BASIN_D, RIVER_C, RIVER_D,
                              DISC_DIM, GAT_DIM, GAT_LAYERS, LSTM_DIM, HEAD_DIM, MIX),
        "decoder": init_coder(k_dec, ERA5, BASIN_C, BASIN_D, RIVER_C, RIVER_D,
                              DISC_DIM, GAT_DIM, GAT_LAYERS, LSTM_DIM, HEAD_DIM, MIX),
        "hiddenBridge": init_linear(k_bh, LSTM_DIM, LSTM_DIM),
        "cellBridge": init_linear(k_bc, LSTM_DIM, LSTM_DIM),
    }

    nodes = jnp.array([NODES_PER] * B, jnp.int32)
    edges = []
    for g in range(B):
        off = g * NODES_PER
        for i in range(NODES_PER):
            edges.append((off + i, off + (i + 1) % NODES_PER))
    src = jnp.array([e[0] for e in edges], jnp.int32)
    dst = jnp.array([e[1] for e in edges], jnp.int32)

    past = make_inputs(k_past, N, T_PAST, ERA5, BASIN_C, BASIN_D, RIVER_C, RIVER_D,
                       B, nodes, (src, dst))
    future = make_inputs(k_fut, N, T_FUT, ERA5, BASIN_C, BASIN_D, RIVER_C, RIVER_D,
                         B, nodes, (src, dst))

    hindcast, forecast = station_forward(params, past, future, future_steps=T_FUT)
    jax.block_until_ready((hindcast, forecast))
    print("KERNEL_OK")
</pallas_src>

<mosaic_0001>
module attributes {stable_mosaic.version = 11 : i64} {
  func.func @_basin_gat_kernel(%arg0: i32, %arg1: memref<8x8x6xf32, #tpu.memory_space<vmem>>, %arg2: memref<8x32xf32, #tpu.memory_space<vmem>>, %arg3: memref<8x32xf32, #tpu.memory_space<vmem>>, %arg4: memref<8x8xf32, #tpu.memory_space<vmem>>, %arg5: memref<6x32xbf16, #tpu.memory_space<vmem>>, %arg6: memref<32x32xbf16, #tpu.memory_space<vmem>>, %arg7: memref<2x32x32xbf16, #tpu.memory_space<vmem>>, %arg8: memref<2x1x32xf32, #tpu.memory_space<vmem>>, %arg9: memref<2x1x32xf32, #tpu.memory_space<vmem>>, %arg10: memref<2x1x32xf32, #tpu.memory_space<vmem>>, %arg11: memref<8x8x32xf32, #tpu.memory_space<vmem>>) attributes {dimension_semantics = [#tpu.dimension_semantics<parallel>], iteration_bounds = array<i64: 1>, scalar_prefetch = 0 : i64, scratch_operands = 0 : i64, tpu.core_type = #tpu.core_type<tc>, window_params = [{transform_indices = @transform_0, window_bounds = array<i64: 8, 8, 6>}, {pipeline_mode = #tpu.pipeline_mode<synchronous>, transform_indices = @transform_1, window_bounds = array<i64: 8, 32>}, {pipeline_mode = #tpu.pipeline_mode<synchronous>, transform_indices = @transform_2, window_bounds = array<i64: 8, 32>}, {pipeline_mode = #tpu.pipeline_mode<synchronous>, transform_indices = @transform_3, window_bounds = array<i64: 8, 8>}, {pipeline_mode = #tpu.pipeline_mode<synchronous>, transform_indices = @transform_4, window_bounds = array<i64: 6, 32>}, {pipeline_mode = #tpu.pipeline_mode<synchronous>, transform_indices = @transform_5, window_bounds = array<i64: 32, 32>}, {pipeline_mode = #tpu.pipeline_mode<synchronous>, transform_indices = @transform_6, window_bounds = array<i64: 2, 32, 32>}, {pipeline_mode = #tpu.pipeline_mode<synchronous>, transform_indices = @transform_7, window_bounds = array<i64: 2, 1, 32>}, {pipeline_mode = #tpu.pipeline_mode<synchronous>, transform_indices = @transform_8, window_bounds = array<i64: 2, 1, 32>}, {pipeline_mode = #tpu.pipeline_mode<synchronous>, transform_indices = @transform_9, window_bounds = array<i64: 2, 1, 32>}, {transform_indices = @transform_10, window_bounds = array<i64: 8, 8, 32>}]} {
    %c0 = arith.constant 0 : index
    %c0_0 = arith.constant 0 : index
    %c0_1 = arith.constant 0 : index
    %0 = vector.load %arg1[%c0, %c0_0, %c0_1] : memref<8x8x6xf32, #tpu.memory_space<vmem>>, vector<8x8x6xf32>
    %1 = vector.shape_cast %0 : vector<8x8x6xf32> to vector<64x6xf32>
    %2 = arith.truncf %1 : vector<64x6xf32> to vector<64x6xbf16>
    %c0_2 = arith.constant 0 : index
    %c0_3 = arith.constant 0 : index
    %3 = vector.load %arg5[%c0_2, %c0_3] : memref<6x32xbf16, #tpu.memory_space<vmem>>, vector<6x32xbf16>
    %cst = arith.constant dense<0.000000e+00> : vector<64x32xf32>
    %4 = tpu.matmul %2, %3, %cst {dimension_numbers = #tpu.dot_dimension_numbers<[1], [0], [0], [1], [0, 0, 1, 1], [], []>} : vector<64x6xbf16>, vector<6x32xbf16>, vector<64x32xf32> -> vector<64x32xf32>
    %5 = vector.shape_cast %4 : vector<64x32xf32> to vector<8x8x32xf32>
    %c0_4 = arith.constant 0 : index
    %c0_5 = arith.constant 0 : index
    %6 = vector.load %arg2[%c0_4, %c0_5] : memref<8x32xf32, #tpu.memory_space<vmem>>, vector<8x32xf32>
    %7 = vector.shape_cast %6 : vector<8x32xf32> to vector<8x1x32xf32>
    %8 = vector.broadcast %7 : vector<8x1x32xf32> to vector<8x8x32xf32>
    %9 = arith.addf %5, %8 : vector<8x8x32xf32>
    %10 = math.tanh %9 : vector<8x8x32xf32>
    %11 = vector.shape_cast %10 : vector<8x8x32xf32> to vector<64x32xf32>
    %12 = arith.truncf %11 : vector<64x32xf32> to vector<64x32xbf16>
    %c0_6 = arith.constant 0 : index
    %c0_7 = arith.constant 0 : index
    %13 = vector.load %arg6[%c0_6, %c0_7] : memref<32x32xbf16, #tpu.memory_space<vmem>>, vector<32x32xbf16>
    %cst_8 = arith.constant dense<0.000000e+00> : vector<64x32xf32>
    %14 = tpu.matmul %12, %13, %cst_8 {dimension_numbers = #tpu.dot_dimension_numbers<[1], [0], [0], [1], [0, 0, 1, 1], [], []>} : vector<64x32xbf16>, vector<32x32xbf16>, vector<64x32xf32> -> vector<64x32xf32>
    %15 = vector.shape_cast %14 : vector<64x32xf32> to vector<8x8x32xf32>
    %c0_9 = arith.constant 0 : index
    %c0_10 = arith.constant 0 : index
    %16 = vector.load %arg3[%c0_9, %c0_10] : memref<8x32xf32, #tpu.memory_space<vmem>>, vector<8x32xf32>
    %17 = vector.shape_cast %16 : vector<8x32xf32> to vector<8x1x32xf32>
    %18 = vector.broadcast %17 : vector<8x1x32xf32> to vector<8x8x32xf32>
    %19 = arith.addf %15, %18 : vector<8x8x32xf32>
    %20 = math.tanh %19 : vector<8x8x32xf32>
    %21 = tpu.transpose %20, [1, 0, 2] : vector<8x8x32xf32> -> vector<8x8x32xf32>
    %c0_11 = arith.constant 0 : index
    %c0_12 = arith.constant 0 : index
    %22 = vector.load %arg4[%c0_11, %c0_12] : memref<8x8xf32, #tpu.memory_space<vmem>>, vector<8x8xf32>
    %23 = vector.shape_cast %21 : vector<8x8x32xf32> to vector<64x32xf32>
    %24 = arith.truncf %23 : vector<64x32xf32> to vector<64x32xbf16>
    %c0_13 = arith.constant 0 : index
    %c0_14 = arith.constant 0 : index
    %c0_15 = arith.constant 0 : index
    %25 = vector.load %arg7[%c0_13, %c0_14, %c0_15] : memref<2x32x32xbf16, #tpu.memory_space<vmem>>, vector<1x32x32xbf16>
    %26 = vector.shape_cast %25 : vector<1x32x32xbf16> to vector<32x32xbf16>
    %cst_16 = arith.constant dense<0.000000e+00> : vector<64x32xf32>
    %27 = tpu.matmul %24, %26, %cst_16 {dimension_numbers = #tpu.dot_dimension_numbers<[1], [0], [0], [1], [0, 0, 1, 1], [], []>} : vector<64x32xbf16>, vector<32x32xbf16>, vector<64x32xf32> -> vector<64x32xf32>
    %28 = vector.shape_cast %27 : vector<64x32xf32> to vector<8x8x32xf32>
    %c0_17 = arith.constant 0 : index
    %c0_18 = arith.constant 0 : index
    %c0_19 = arith.constant 0 : index
    %29 = vector.load %arg8[%c0_17, %c0_18, %c0_19] : memref<2x1x32xf32, #tpu.memory_space<vmem>>, vector<1x1x32xf32>
    %30 = vector.shape_cast %29 : vector<1x1x32xf32> to vector<1x32xf32>
    %31 = vector.shape_cast %30 : vector<1x32xf32> to vector<1x1x32xf32>
    %32 = vector.broadcast %31 : vector<1x1x32xf32> to vector<8x8x32xf32>
    %33 = arith.mulf %28, %32 : vector<8x8x32xf32>
    %cst_20 = arith.constant dense<0.000000e+00> : vector<8x8xf32>
    %34 = vector.multi_reduction <add>, %33, %cst_20 [2] : vector<8x8x32xf32> to vector<8x8xf32>
    %c0_21 = arith.constant 0 : index
    %c0_22 = arith.constant 0 : index
    %c0_23 = arith.constant 0 : index
    %35 = vector.load %arg9[%c0_21, %c0_22, %c0_23] : memref<2x1x32xf32, #tpu.memory_space<vmem>>, vector<1x1x32xf32>
    %36 = vector.shape_cast %35 : vector<1x1x32xf32> to vector<1x32xf32>
    %37 = vector.shape_cast %36 : vector<1x32xf32> to vector<1x1x32xf32>
    %38 = vector.broadcast %37 : vector<1x1x32xf32> to vector<8x8x32xf32>
    %39 = arith.mulf %28, %38 : vector<8x8x32xf32>
    %cst_24 = arith.constant dense<0.000000e+00> : vector<8x8xf32>
    %40 = vector.multi_reduction <add>, %39, %cst_24 [2] : vector<8x8x32xf32> to vector<8x8xf32>
    %41 = vector.shape_cast %40 : vector<8x8xf32> to vector<8x8x1xf32>
    %42 = vector.shape_cast %34 : vector<8x8xf32> to vector<8x1x8xf32>
    %43 = vector.broadcast %41 : vector<8x8x1xf32> to vector<8x8x8xf32>
    %44 = vector.broadcast %42 : vector<8x1x8xf32> to vector<8x8x8xf32>
    %45 = arith.addf %43, %44 : vector<8x8x8xf32>
    %cst_25 = arith.constant 0.000000e+00 : f32
    %46 = vector.broadcast %cst_25 : f32 to vector<8x8x8xf32>
    %47 = arith.cmpf ogt, %45, %46 : vector<8x8x8xf32>
    %cst_26 = arith.constant 2.000000e-01 : f32
    %48 = vector.broadcast %cst_26 : f32 to vector<8x8x8xf32>
    %49 = arith.mulf %48, %45 : vector<8x8x8xf32>
    %50 = arith.select %47, %45, %49 : vector<8x8x8xi1>, vector<8x8x8xf32>
    %51 = vector.shape_cast %22 : vector<8x8xf32> to vector<1x8x8xf32>
    %52 = vector.broadcast %51 : vector<1x8x8xf32> to vector<8x8x8xf32>
    %53 = arith.addf %50, %52 : vector<8x8x8xf32>
    %cst_27 = arith.constant dense<0xFF800000> : vector<8x8xf32>
    %54 = vector.multi_reduction <maximumf>, %53, %cst_27 [2] : vector<8x8x8xf32> to vector<8x8xf32>
    %55 = vector.shape_cast %54 : vector<8x8xf32> to vector<8x8x1xf32>
    %56 = vector.broadcast %55 : vector<8x8x1xf32> to vector<8x8x8xf32>
    %57 = arith.subf %53, %56 : vector<8x8x8xf32>
    %58 = math.exp %57 : vector<8x8x8xf32>
    %cst_28 = arith.constant dense<0.000000e+00> : vector<8x8xf32>
    %59 = vector.multi_reduction <add>, %58, %cst_28 [2] : vector<8x8x8xf32> to vector<8x8xf32>
    %60 = vector.shape_cast %59 : vector<8x8xf32> to vector<8x8x1xf32>
    %61 = tpu.reciprocal %60 {approx = true} : vector<8x8x1xf32> -> vector<8x8x1xf32>
    %62 = vector.broadcast %61 : vector<8x8x1xf32> to vector<8x8x8xf32>
    %63 = arith.mulf %58, %62 : vector<8x8x8xf32>
    %64 = arith.truncf %63 : vector<8x8x8xf32> to vector<8x8x8xbf16>
    %65 = arith.truncf %28 : vector<8x8x32xf32> to vector<8x8x32xbf16>
    "tpu.trace_start"() <{level = 10 : i32, message = "tij,tjd->tid"}> : () -> ()
    %cst_29 = arith.constant dense<0.000000e+00> : vector<8x8x32xf32>
    %66 = tpu.matmul %64, %65, %cst_29 {dimension_numbers = #tpu.dot_dimension_numbers<[2], [1], [1], [2], [0, 0, 0, 1, 1, 2], [0], [0]>} : vector<8x8x8xbf16>, vector<8x8x32xbf16>, vector<8x8x32xf32> -> vector<8x8x32xf32>
    "tpu.trace_stop"() : () -> ()
    %c0_30 = arith.constant 0 : index
    %c0_31 = arith.constant 0 : index
    %c0_32 = arith.constant 0 : index
    %67 = vector.load %arg10[%c0_30, %c0_31, %c0_32] : memref<2x1x32xf32, #tpu.memory_space<vmem>>, vector<1x1x32xf32>
    %68 = vector.shape_cast %67 : vector<1x1x32xf32> to vector<1x32xf32>
    %69 = vector.shape_cast %68 : vector<1x32xf32> to vector<1x1x32xf32>
    %70 = vector.broadcast %69 : vector<1x1x32xf32> to vector<8x8x32xf32>
    %71 = arith.addf %66, %70 : vector<8x8x32xf32>
    %cst_33 = arith.constant 0.000000e+00 : f32
    %72 = vector.broadcast %cst_33 : f32 to vector<8x8x32xf32>
    %73 = arith.maximumf %71, %72 : vector<8x8x32xf32>
    %74 = vector.shape_cast %73 : vector<8x8x32xf32> to vector<64x32xf32>
    %75 = arith.truncf %74 : vector<64x32xf32> to vector<64x32xbf16>
    %c1 = arith.constant 1 : index
    %c0_34 = arith.constant 0 : index
    %c0_35 = arith.constant 0 : index
    %76 = vector.load %arg7[%c1, %c0_34, %c0_35] : memref<2x32x32xbf16, #tpu.memory_space<vmem>>, vector<1x32x32xbf16>
    %77 = vector.shape_cast %76 : vector<1x32x32xbf16> to vector<32x32xbf16>
    %cst_36 = arith.constant dense<0.000000e+00> : vector<64x32xf32>
    %78 = tpu.matmul %75, %77, %cst_36 {dimension_numbers = #tpu.dot_dimension_numbers<[1], [0], [0], [1], [0, 0, 1, 1], [], []>} : vector<64x32xbf16>, vector<32x32xbf16>, vector<64x32xf32> -> vector<64x32xf32>
    %79 = vector.shape_cast %78 : vector<64x32xf32> to vector<8x8x32xf32>
    %c1_37 = arith.constant 1 : index
    %c0_38 = arith.constant 0 : index
    %c0_39 = arith.constant 0 : index
    %80 = vector.load %arg8[%c1_37, %c0_38, %c0_39] : memref<2x1x32xf32, #tpu.memory_space<vmem>>, vector<1x1x32xf32>
    %81 = vector.shape_cast %80 : vector<1x1x32xf32> to vector<1x32xf32>
    %82 = vector.shape_cast %81 : vector<1x32xf32> to vector<1x1x32xf32>
    %83 = vector.broadcast %82 : vector<1x1x32xf32> to vector<8x8x32xf32>
    %84 = arith.mulf %79, %83 : vector<8x8x32xf32>
    %cst_40 = arith.constant dense<0.000000e+00> : vector<8x8xf32>
    %85 = vector.multi_reduction <add>, %84, %cst_40 [2] : vector<8x8x32xf32> to vector<8x8xf32>
    %c1_41 = arith.constant 1 : index
    %c0_42 = arith.constant 0 : index
    %c0_43 = arith.constant 0 : index
    %86 = vector.load %arg9[%c1_41, %c0_42, %c0_43] : memref<2x1x32xf32, #tpu.memory_space<vmem>>, vector<1x1x32xf32>
    %87 = vector.shape_cast %86 : vector<1x1x32xf32> to vector<1x32xf32>
    %88 = vector.shape_cast %87 : vector<1x32xf32> to vector<1x1x32xf32>
    %89 = vector.broadcast %88 : vector<1x1x32xf32> to vector<8x8x32xf32>
    %90 = arith.mulf %79, %89 : vector<8x8x32xf32>
    %cst_44 = arith.constant dense<0.000000e+00> : vector<8x8xf32>
    %91 = vector.multi_reduction <add>, %90, %cst_44 [2] : vector<8x8x32xf32> to vector<8x8xf32>
    %92 = vector.shape_cast %91 : vector<8x8xf32> to vector<8x8x1xf32>
    %93 = vector.shape_cast %85 : vector<8x8xf32> to vector<8x1x8xf32>
    %94 = vector.broadcast %92 : vector<8x8x1xf32> to vector<8x8x8xf32>
    %95 = vector.broadcast %93 : vector<8x1x8xf32> to vector<8x8x8xf32>
    %96 = arith.addf %94, %95 : vector<8x8x8xf32>
    %cst_45 = arith.constant 0.000000e+00 : f32
    %97 = vector.broadcast %cst_45 : f32 to vector<8x8x8xf32>
    %98 = arith.cmpf ogt, %96, %97 : vector<8x8x8xf32>
    %cst_46 = arith.constant 2.000000e-01 : f32
    %99 = vector.broadcast %cst_46 : f32 to vector<8x8x8xf32>
    %100 = arith.mulf %99, %96 : vector<8x8x8xf32>
    %101 = arith.select %98, %96, %100 : vector<8x8x8xi1>, vector<8x8x8xf32>
    %102 = vector.shape_cast %22 : vector<8x8xf32> to vector<1x8x8xf32>
    %103 = vector.broadcast %102 : vector<1x8x8xf32> to vector<8x8x8xf32>
    %104 = arith.addf %101, %103 : vector<8x8x8xf32>
    %cst_47 = arith.constant dense<0xFF800000> : vector<8x8xf32>
    %105 = vector.multi_reduction <maximumf>, %104, %cst_47 [2] : vector<8x8x8xf32> to vector<8x8xf32>
    %106 = vector.shape_cast %105 : vector<8x8xf32> to vector<8x8x1xf32>
    %107 = vector.broadcast %106 : vector<8x8x1xf32> to vector<8x8x8xf32>
    %108 = arith.subf %104, %107 : vector<8x8x8xf32>
    %109 = math.exp %108 : vector<8x8x8xf32>
    %cst_48 = arith.constant dense<0.000000e+00> : vector<8x8xf32>
    %110 = vector.multi_reduction <add>, %109, %cst_48 [2] : vector<8x8x8xf32> to vector<8x8xf32>
    %111 = vector.shape_cast %110 : vector<8x8xf32> to vector<8x8x1xf32>
    %112 = tpu.reciprocal %111 {approx = true} : vector<8x8x1xf32> -> vector<8x8x1xf32>
    %113 = vector.broadcast %112 : vector<8x8x1xf32> to vector<8x8x8xf32>
    %114 = arith.mulf %109, %113 : vector<8x8x8xf32>
    %115 = arith.truncf %114 : vector<8x8x8xf32> to vector<8x8x8xbf16>
    %116 = arith.truncf %79 : vector<8x8x32xf32> to vector<8x8x32xbf16>
    "tpu.trace_start"() <{level = 10 : i32, message = "tij,tjd->tid"}> : () -> ()
    %cst_49 = arith.constant dense<0.000000e+00> : vector<8x8x32xf32>
    %117 = tpu.matmul %115, %116, %cst_49 {dimension_numbers = #tpu.dot_dimension_numbers<[2], [1], [1], [2], [0, 0, 0, 1, 1, 2], [0], [0]>} : vector<8x8x8xbf16>, vector<8x8x32xbf16>, vector<8x8x32xf32> -> vector<8x8x32xf32>
    "tpu.trace_stop"() : () -> ()
    %c1_50 = arith.constant 1 : index
    %c0_51 = arith.constant 0 : index
    %c0_52 = arith.constant 0 : index
    %118 = vector.load %arg10[%c1_50, %c0_51, %c0_52] : memref<2x1x32xf32, #tpu.memory_space<vmem>>, vector<1x1x32xf32>
    %119 = vector.shape_cast %118 : vector<1x1x32xf32> to vector<1x32xf32>
    %120 = vector.shape_cast %119 : vector<1x32xf32> to vector<1x1x32xf32>
    %121 = vector.broadcast %120 : vector<1x1x32xf32> to vector<8x8x32xf32>
    %122 = arith.addf %117, %121 : vector<8x8x32xf32>
    %c0_53 = arith.constant 0 : index
    %c0_54 = arith.constant 0 : index
    %c0_55 = arith.constant 0 : index
    %123 = vector.load %arg11[%c0_53, %c0_54, %c0_55] : memref<8x8x32xf32, #tpu.memory_space<vmem>>, vector<8x8x32xf32>
    tpu.vector_store %arg11[%c0_53, %c0_54, %c0_55], %122 {strides = array<i32>} : memref<8x8x32xf32, #tpu.memory_space<vmem>>, vector<8x8x32xf32>,
    return
  }
  func.func @transform_0(%arg0: i32) -> (i32, i32, i32) {
    %c0_i32 = arith.constant 0 : i32
    %c0_i32_0 = arith.constant 0 : i32
    %c0_i32_1 = arith.constant 0 : i32
    return %c0_i32, %arg0, %c0_i32_0 : i32, i32, i32
  }
  func.func @transform_1(%arg0: i32) -> (i32, i32) {
    %c0_i32 = arith.constant 0 : i32
    %c0_i32_0 = arith.constant 0 : i32
    %c0_i32_1 = arith.constant 0 : i32
    return %c0_i32, %c0_i32_0 : i32, i32
  }
  func.func @transform_2(%arg0: i32) -> (i32, i32) {
    %c0_i32 = arith.constant 0 : i32
    %c0_i32_0 = arith.constant 0 : i32
    %c0_i32_1 = arith.constant 0 : i32
    return %c0_i32, %c0_i32_0 : i32, i32
  }
  func.func @transform_3(%arg0: i32) -> (i32, i32) {
    %c0_i32 = arith.constant 0 : i32
    %c0_i32_0 = arith.constant 0 : i32
    %c0_i32_1 = arith.constant 0 : i32
    return %c0_i32, %c0_i32_0 : i32, i32
  }
  func.func @transform_4(%arg0: i32) -> (i32, i32) {
    %c0_i32 = arith.constant 0 : i32
    %c0_i32_0 = arith.constant 0 : i32
    %c0_i32_1 = arith.constant 0 : i32
    return %c0_i32, %c0_i32_0 : i32, i32
  }
  func.func @transform_5(%arg0: i32) -> (i32, i32) {
    %c0_i32 = arith.constant 0 : i32
    %c0_i32_0 = arith.constant 0 : i32
    %c0_i32_1 = arith.constant 0 : i32
    return %c0_i32, %c0_i32_0 : i32, i32
  }
  func.func @transform_6(%arg0: i32) -> (i32, i32, i32) {
    %c0_i32 = arith.constant 0 : i32
    %c0_i32_0 = arith.constant 0 : i32
    %c0_i32_1 = arith.constant 0 : i32
    %c0_i32_2 = arith.constant 0 : i32
    return %c0_i32, %c0_i32_0, %c0_i32_1 : i32, i32, i32
  }
  func.func @transform_7(%arg0: i32) -> (i32, i32, i32) {
    %c0_i32 = arith.constant 0 : i32
    %c0_i32_0 = arith.constant 0 : i32
    %c0_i32_1 = arith.constant 0 : i32
    %c0_i32_2 = arith.constant 0 : i32
    return %c0_i32, %c0_i32_0, %c0_i32_1 : i32, i32, i32
  }
  func.func @transform_8(%arg0: i32) -> (i32, i32, i32) {
    %c0_i32 = arith.constant 0 : i32
    %c0_i32_0 = arith.constant 0 : i32
    %c0_i32_1 = arith.constant 0 : i32
    %c0_i32_2 = arith.constant 0 : i32
    return %c0_i32, %c0_i32_0, %c0_i32_1 : i32, i32, i32
  }
  func.func @transform_9(%arg0: i32) -> (i32, i32, i32) {
    %c0_i32 = arith.constant 0 : i32
    %c0_i32_0 = arith.constant 0 : i32
    %c0_i32_1 = arith.constant 0 : i32
    %c0_i32_2 = arith.constant 0 : i32
    return %c0_i32, %c0_i32_0, %c0_i32_1 : i32, i32, i32
  }
  func.func @transform_10(%arg0: i32) -> (i32, i32, i32) {
    %c0_i32 = arith.constant 0 : i32
    %c0_i32_0 = arith.constant 0 : i32
    %c0_i32_1 = arith.constant 0 : i32
    return %arg0, %c0_i32, %c0_i32_0 : i32, i32, i32
  }
}

</mosaic_0001>

<llo_original>
// kernel: tpu_custom_call.1
$region0: #{tpu_custom_call.1}
  #allocation0 [shape = 'u32[]', space=smem, size = 0x4, offset = 0x4, fixed_abs, tag = 'smem constant byte address 0x4 - core index']
  #allocation1 [shape = 'u32[72,128]{1,0:T(1,128)}', space=vmem, size = 0x9000, scoped, tag = 'internal scratch']
  %s0 = inlined_call_operand.vmem [shape: f32[8,8,6], index: 0, kind: input, shape index: {}]
  %s1 = inlined_call_operand.vmem [shape: f32[8,32], index: 1, kind: input, shape index: {}]
  %s2 = inlined_call_operand.vmem [shape: f32[8,32], index: 2, kind: input, shape index: {}]
  %s3 = inlined_call_operand.vmem [shape: f32[8,8], index: 3, kind: input, shape index: {}]
  %s4 = inlined_call_operand.vmem [shape: bf16[6,32], index: 4, kind: input, shape index: {}]
  %s5 = inlined_call_operand.vmem [shape: bf16[32,32], index: 5, kind: input, shape index: {}]
  %s6 = inlined_call_operand.vmem [shape: bf16[2,32,32], index: 6, kind: input, shape index: {}]
  %s7 = inlined_call_operand.vmem [shape: f32[2,1,32], index: 7, kind: input, shape index: {}]
  %s8 = inlined_call_operand.vmem [shape: f32[2,1,32], index: 8, kind: input, shape index: {}]
  %s9 = inlined_call_operand.vmem [shape: f32[2,1,32], index: 9, kind: input, shape index: {}]
  %s10 = inlined_call_operand.hbm [shape: f32[8,8,32], index: 10, kind: output, shape index: {}]
  %s11 = sld [smem:[#allocation0]]
  $region50: #{tpu_custom_call.1} parent=0
    _
  %s13 = ssub.s32 1, %s11
  %s14 = scalar_select 0, %s13, %s11
  $region1: #{tpu_custom_call.1} parent=0
    #allocation2 [shape = 'u8[32768]{0}', space=vmem, size = 0x8000, scoped, tag = 'output window, operand 0, single buffered']
    #allocation3 [shape = 's32[1]{0}', space=sflag, size = 0x4, scoped, tag = 'scoped memory for tpu_custom_call.1']
    %15 = vsyncpa [#allocation3], 0
    // Predicated region
    $region2: #{tpu_custom_call.1} parent=1 // pred_check
      _
    $region3: #{tpu_custom_call.1} parent=1 // pred_check_branch
      %17 = sbr.rel (0) target = $region5
    $region4: #{tpu_custom_call.1} parent=1 // pred_region
      _
    $region5: #{tpu_custom_call.1} parent=1 // pred_fallthru
      _
    // Predicated region
    $region6: #{tpu_custom_call.1} parent=1 // pred_check
      _
    $region7: #{tpu_custom_call.1} parent=1 // pred_check_branch
      %19 = sbr.rel (0) target = $region9
    $region8: #{tpu_custom_call.1} parent=1 // pred_region
      _
    $region9: #{tpu_custom_call.1} parent=1 // pred_fallthru
      _
    // Predicated region
    $region10: #{tpu_custom_call.1} parent=1 // pred_check
      _
    $region11: #{tpu_custom_call.1} parent=1 // pred_check_branch
      %21 = sbr.rel (0) target = $region13
    $region12: #{tpu_custom_call.1} parent=1 // pred_region
      _
    $region13: #{tpu_custom_call.1} parent=1 // pred_fallthru
      _
    // Predicated region
    $region14: #{tpu_custom_call.1} parent=1 // pred_check
      _
    $region15: #{tpu_custom_call.1} parent=1 // pred_check_branch
      %23 = sbr.rel (0) target = $region17
    $region16: #{tpu_custom_call.1} parent=1 // pred_region
      _
    $region17: #{tpu_custom_call.1} parent=1 // pred_fallthru
      _
    // Predicated region
    $region18: #{tpu_custom_call.1} parent=1 // pred_check
      _
    $region19: #{tpu_custom_call.1} parent=1 // pred_check_branch
      %25 = sbr.rel (0) target = $region21
    $region20: #{tpu_custom_call.1} parent=1 // pred_region
      _
    $region21: #{tpu_custom_call.1} parent=1 // pred_fallthru
      _
    // Predicated region
    $region22: #{tpu_custom_call.1} parent=1 // pred_check
      _
    $region23: #{tpu_custom_call.1} parent=1 // pred_check_branch
      %27 = sbr.rel (0) target = $region25
    $region24: #{tpu_custom_call.1} parent=1 // pred_region
      _
    $region25: #{tpu_custom_call.1} parent=1 // pred_fallthru
      _
    // Predicated region
    $region26: #{tpu_custom_call.1} parent=1 // pred_check
      _
    $region27: #{tpu_custom_call.1} parent=1 // pred_check_branch
      %29 = sbr.rel (0) target = $region29
    $region28: #{tpu_custom_call.1} parent=1 // pred_region
      _
    $region29: #{tpu_custom_call.1} parent=1 // pred_fallthru
      _
    // Predicated region
    $region30: #{tpu_custom_call.1} parent=1 // pred_check
      _
    $region31: #{tpu_custom_call.1} parent=1 // pred_check_branch
      %31 = sbr.rel (0) target = $region33
    $region32: #{tpu_custom_call.1} parent=1 // pred_region
      _
    $region33: #{tpu_custom_call.1} parent=1 // pred_fallthru
      _
    // Predicated region
    $region34: #{tpu_custom_call.1} parent=1 // pred_check
      _
    $region35: #{tpu_custom_call.1} parent=1 // pred_check_branch
      %33 = sbr.rel (0) target = $region37
    $region36: #{tpu_custom_call.1} parent=1 // pred_region
      _
    $region37: #{tpu_custom_call.1} parent=1 // pred_fallthru
      _
    // Predicated region
    $region38: #{tpu_custom_call.1} parent=1 // pred_check
      _
    $region39: #{tpu_custom_call.1} parent=1 // pred_check_branch
      %35 = sbr.rel (0) target = $region41
    $region40: #{tpu_custom_call.1} parent=1 // pred_region
      _
    $region41: #{tpu_custom_call.1} parent=1 // pred_fallthru
      _
    %v37 = vld [vmem:[%s0] sm:$0xff]
    %v38 = vld [vmem:[%s0 + $0x8] sm:$0xff]
    %v39 = vld [vmem:[%s0 + $0x10] sm:$0xff]
    %v40 = vld [vmem:[%s0 + $0x18] sm:$0xff]
    %v41 = vld [vmem:[%s0 + $0x20] sm:$0xff]
    %v42 = vld [vmem:[%s0 + $0x28] sm:$0xff]
    %v43 = vld [vmem:[%s0 + $0x30] sm:$0xff]
    %v44 = vld [vmem:[%s0 + $0x38] sm:$0xff]
    %v45 = vpack.c.bf16 %v38, %v37
    %v46 = vpack.c.bf16 %v40, %v39
    %v47 = vpack.c.bf16 %v42, %v41
    %v48 = vpack.c.bf16 %v44, %v43
    %v49 = vld [vmem:[%s4] sm:$0x7]
    %vm50 = vcmask 48128
    %v52 = vsel %vm50, %v45, 0
    %v55 = vsel %vm50, %v46, 0
    %v58 = vsel %vm50, %v47, 0
    %v61 = vsel %vm50, %v48, 0
    %vm63 = vcmask 1042432
    %v65 = vsel %vm63, %v49, 0
    %67 = vmatpush.bf16.msra.mxu0 0
    %68 = vmatpush.bf16.msra.mxu0 0
    %69 = vmatpush.bf16.msra.mxu0 0
    %70 = vmatpush.bf16.msra.mxu0 0
    %71 = vmatpush.bf16.msra.mxu0 0
    %72 = vmatpush.bf16.msra.mxu0 0
    %73 = vmatpush.bf16.msra.mxu0 0
    %74 = vmatpush.bf16.msra.mxu0 %v65
    %75 = vmatmul.bf16.gmra.mxu0 %v52
    %v76 = vpop.f32.mrf.mxu0
    %v77 = vadd.f32 0.0, %v76
    %v78 = vpop.f32.mrf.mxu0
    %v79 = vadd.f32 0.0, %v78
    %80 = vmatmul.bf16.gmra.mxu0 %v55
    %v81 = vpop.f32.mrf.mxu0
    %v82 = vadd.f32 0.0, %v81
    %v83 = vpop.f32.mrf.mxu0
    %v84 = vadd.f32 0.0, %v83
    %85 = vmatmul.bf16.gmra.mxu0 %v58
    %v86 = vpop.f32.mrf.mxu0
    %v87 = vadd.f32 0.0, %v86
    %v88 = vpop.f32.mrf.mxu0
    %v89 = vadd.f32 0.0, %v88
    %90 = vmatmul.bf16.gmra.mxu0 %v61
    %v91 = vpop.f32.mrf.mxu0
    %v92 = vadd.f32 0.0, %v91
    %v93 = vpop.f32.mrf.mxu0
    %v94 = vadd.f32 0.0, %v93
    %95 = vdwg.mxu0
    %v96 = vld [vmem:[%s1] sm:$0xff]
    %v98 = vrot.slane %v96, 1
    %v99 = vrot.slane %v96, 2
    %v100 = vrot.slane %v96, 3
    %v101 = vrot.slane %v96, 4
    %v102 = vrot.slane %v96, 5
    %v103 = vrot.slane %v96, 6
    %v104 = vrot.slane %v96, 7
    %v105 = vperm.slane %v96, 0
    %v106 = vperm.slane %v98, 0
    %v107 = vperm.slane %v99, 0
    %v108 = vperm.slane %v100, 0
    %v109 = vperm.slane %v101, 0
    %v110 = vperm.slane %v102, 0
    %v111 = vperm.slane %v103, 0
    %v112 = vperm.slane %v104, 0
    %v121 = vadd.f32 %v77, %v105
    %v122 = vadd.f32 %v79, %v106
    %v123 = vadd.f32 %v82, %v107
    %v124 = vadd.f32 %v84, %v108
    %v125 = vadd.f32 %v87, %v109
    %v126 = vadd.f32 %v89, %v110
    %v127 = vadd.f32 %v92, %v111
    %v128 = vadd.f32 %v94, %v112
    %v129 = vtanh.pop %v121
    %v130 = vtanh.pop %v122
    %v131 = vtanh.pop %v123
    %v132 = vtanh.pop %v124
    %v133 = vtanh.pop %v125
    %v134 = vtanh.pop %v126
    %v135 = vtanh.pop %v127
    %v136 = vtanh.pop %v128
    %v137 = vpack.c.bf16 %v130, %v129
    %v138 = vpack.c.bf16 %v132, %v131
    %v139 = vpack.c.bf16 %v134, %v133
    %v140 = vpack.c.bf16 %v136, %v135
    %v141 = vld [vmem:[%s5] sm:$0xf]
    %v142 = vld [vmem:[%s5 + $0x4] sm:$0xf]
    %v143 = vld [vmem:[%s5 + $0x8] sm:$0xf]
    %v144 = vld [vmem:[%s5 + $0xc] sm:$0xf]
    %v149 = vunpack.c.l.b16 %v141
    %v150 = vunpack.c.l.b16 %v142
    %v151 = vunpack.c.l.b16 %v143
    %v152 = vunpack.c.l.b16 %v144
    %v153 = vpack.c.b16 %v150, %v149
    %v154 = vpack.c.b16 %v152, %v151
    %vm157 = vcmask 261120
    %v159 = vsel %vm157, %v137, 0
    %v162 = vsel %vm157, %v138, 0
    %v165 = vsel %vm157, %v139, 0
    %v168 = vsel %vm157, %v140, 0
    %170 = vmatpush.bf16.msra.mxu0 0
    %171 = vmatpush.bf16.msra.mxu0 0
    %172 = vmatpush.bf16.msra.mxu0 0
    %173 = vmatpush.bf16.msra.mxu0 0
    %174 = vmatpush.bf16.msra.mxu0 0
    %175 = vmatpush.bf16.msra.mxu0 0
    %176 = vmatpush.bf16.msra.mxu0 %v154
    %177 = vmatpush.bf16.msra.mxu0 %v153
    %178 = vmatmul.bf16.gmra.mxu0 %v159
    %v179 = vpop.f32.mrf.mxu0
    %v180 = vadd.f32 0.0, %v179
    %v181 = vpop.f32.mrf.mxu0
    %v182 = vadd.f32 0.0, %v181
    %183 = vmatmul.bf16.gmra.mxu0 %v162
    %v184 = vpop.f32.mrf.mxu0
    %v185 = vadd.f32 0.0, %v184
    %v186 = vpop.f32.mrf.mxu0
    %v187 = vadd.f32 0.0, %v186
    %188 = vmatmul.bf16.gmra.mxu0 %v165
    %v189 = vpop.f32.mrf.mxu0
    %v190 = vadd.f32 0.0, %v189
    %v191 = vpop.f32.mrf.mxu0
    %v192 = vadd.f32 0.0, %v191
    %193 = vmatmul.bf16.gmra.mxu0 %v168
    %v194 = vpop.f32.mrf.mxu0
    %v195 = vadd.f32 0.0, %v194
    %v196 = vpop.f32.mrf.mxu0
    %v197 = vadd.f32 0.0, %v196
    %198 = vdwg.mxu0
    %v199 = vld [vmem:[%s2] sm:$0xff]
    %v201 = vrot.slane %v199, 1
    %v202 = vrot.slane %v199, 2
    %v203 = vrot.slane %v199, 3
    %v204 = vrot.slane %v199, 4
    %v205 = vrot.slane %v199, 5
    %v206 = vrot.slane %v199, 6
    %v207 = vrot.slane %v199, 7
    %v208 = vperm.slane %v199, 0
    %v209 = vperm.slane %v201, 0
    %v210 = vperm.slane %v202, 0
    %v211 = vperm.slane %v203, 0
    %v212 = vperm.slane %v204, 0
    %v213 = vperm.slane %v205, 0
    %v214 = vperm.slane %v206, 0
    %v215 = vperm.slane %v207, 0
    %v224 = vadd.f32 %v180, %v208
    %v225 = vadd.f32 %v182, %v209
    %v226 = vadd.f32 %v185, %v210
    %v227 = vadd.f32 %v187, %v211
    %v228 = vadd.f32 %v190, %v212
    %v229 = vadd.f32 %v192, %v213
    %v230 = vadd.f32 %v195, %v214
    %v231 = vadd.f32 %v197, %v215
    %v232 = vtanh.pop %v224
    %v233 = vtanh.pop %v225
    %v234 = vtanh.pop %v226
    %v235 = vtanh.pop %v227
    %v236 = vtanh.pop %v228
    %v237 = vtanh.pop %v229
    %v238 = vtanh.pop %v230
    %v239 = vtanh.pop %v231
    %v240 = vrot.slane %v234, 4
    %vm241 = vcmask 1047556
    %v242 = vsel %vm241, %v240, %v232
    %v243 = vrot.slane %v232, 4
    %v244 = vsel %vm241, %v234, %v243
    %v246 = vunpack.c.l.s4 1983009808
    %v247 = vunpack.c.0.s8 %v246
    %v248 = vperm.slane %v242, %v247
    %v250 = vunpack.c.l.s4 1983009808
    %v251 = vunpack.c.0.s8 %v250
    %v252 = vperm.slane %v244, %v251
    %v253 = vrot.slane %v235, 4
    %v254 = vsel %vm241, %v253, %v233
    %v255 = vrot.slane %v233, 4
    %v256 = vsel %vm241, %v235, %v255
    %v258 = vunpack.c.l.s4 1983009808
    %v259 = vunpack.c.0.s8 %v258
    %v260 = vperm.slane %v254, %v259
    %v262 = vunpack.c.l.s4 1983009808
    %v263 = vunpack.c.0.s8 %v262
    %v264 = vperm.slane %v256, %v263
    %v265 = vrot.slane %v238, 4
    %v266 = vsel %vm241, %v265, %v236
    %v267 = vrot.slane %v236, 4
    %v268 = vsel %vm241, %v238, %v267
    %v270 = vunpack.c.l.s4 1983009808
    %v271 = vunpack.c.0.s8 %v270
    %v272 = vperm.slane %v266, %v271
    %v274 = vunpack.c.l.s4 1983009808
    %v275 = vunpack.c.0.s8 %v274
    %v276 = vperm.slane %v268, %v275
    %v277 = vrot.slane %v239, 4
    %v278 = vsel %vm241, %v277, %v237
    %v279 = vrot.slane %v237, 4
    %v280 = vsel %vm241, %v239, %v279
    %v282 = vunpack.c.l.s4 1983009808
    %v283 = vunpack.c.0.s8 %v282
    %v284 = vperm.slane %v278, %v283
    %v286 = vunpack.c.l.s4 1983009808
    %v287 = vunpack.c.0.s8 %v286
    %v288 = vperm.slane %v280, %v287
    %v289 = vrot.slane %v260, 4
    %v290 = vsel %vm241, %v289, %v248
    %v291 = vrot.slane %v248, 4
    %v292 = vsel %vm241, %v260, %v291
    %v294 = vunpack.c.l.s4 1934713408
    %v295 = vunpack.c.0.s8 %v294
    %v296 = vperm.slane %v290, %v295
    %v298 = vunpack.c.l.s4 1934713408
    %v299 = vunpack.c.0.s8 %v298
    %v300 = vperm.slane %v292, %v299
    %v301 = vrot.slane %v264, 4
    %v302 = vsel %vm241, %v301, %v252
    %v303 = vrot.slane %v252, 4
    %v304 = vsel %vm241, %v264, %v303
    %v306 = vunpack.c.l.s4 1934713408
    %v307 = vunpack.c.0.s8 %v306
    %v308 = vperm.slane %v302, %v307
    %v310 = vunpack.c.l.s4 1934713408
    %v311 = vunpack.c.0.s8 %v310
    %v312 = vperm.slane %v304, %v311
    %v313 = vrot.slane %v284, 4
    %v314 = vsel %vm241, %v313, %v272
    %v315 = vrot.slane %v272, 4
    %v316 = vsel %vm241, %v284, %v315
    %v318 = vunpack.c.l.s4 1934713408
    %v319 = vunpack.c.0.s8 %v318
    %v320 = vperm.slane %v314, %v319
    %v322 = vunpack.c.l.s4 1934713408
    %v323 = vunpack.c.0.s8 %v322
    %v324 = vperm.slane %v316, %v323
    %v325 = vrot.slane %v288, 4
    %v326 = vsel %vm241, %v325, %v276
    %v327 = vrot.slane %v276, 4
    %v328 = vsel %vm241, %v288, %v327
    %v330 = vunpack.c.l.s4 1934713408
    %v331 = vunpack.c.0.s8 %v330
    %v332 = vperm.slane %v326, %v331
    %v334 = vunpack.c.l.s4 1934713408
    %v335 = vunpack.c.0.s8 %v334
    %v336 = vperm.slane %v328, %v335
    %v337 = vrot.slane %v320, 4
    %v338 = vsel %vm241, %v337, %v296
    %v339 = vrot.slane %v296, 4
    %v340 = vsel %vm241, %v320, %v339
    %v341 = vrot.slane %v324, 4
    %v342 = vsel %vm241, %v341, %v300
    %v343 = vrot.slane %v300, 4
    %v344 = vsel %vm241, %v324, %v343
    %v345 = vrot.slane %v332, 4
    %v346 = vsel %vm241, %v345, %v308
    %v347 = vrot.slane %v308, 4
    %v348 = vsel %vm241, %v332, %v347
    %v349 = vrot.slane %v336, 4
    %v350 = vsel %vm241, %v349, %v312
    %v351 = vrot.slane %v312, 4
    %v352 = vsel %vm241, %v336, %v351
    %v353 = vld [vmem:[%s3] sm:$0xff]
    %v354 = vpack.c.bf16 %v340, %v338
    %v355 = vpack.c.bf16 %v344, %v342
    %v356 = vpack.c.bf16 %v348, %v346
    %v357 = vpack.c.bf16 %v352, %v350
    %v358 = vld [vmem:[%s6] sm:$0xf]
    %v359 = vld [vmem:[%s6 + $0x4] sm:$0xf]
    %v360 = vld [vmem:[%s6 + $0x8] sm:$0xf]
    %v361 = vld [vmem:[%s6 + $0xc] sm:$0xf]
    %v366 = vunpack.c.l.b16 %v358
    %v367 = vunpack.c.l.b16 %v359
    %v368 = vunpack.c.l.b16 %v360
    %v369 = vunpack.c.l.b16 %v361
    %v370 = vpack.c.b16 %v367, %v366
    %v371 = vpack.c.b16 %v369, %v368
    %v375 = vsel %vm157, %v354, 0
    %v378 = vsel %vm157, %v355, 0
    %v381 = vsel %vm157, %v356, 0
    %v384 = vsel %vm157, %v357, 0
    %386 = vmatpush.bf16.msra.mxu0 0
    %387 = vmatpush.bf16.msra.mxu0 0
    %388 = vmatpush.bf16.msra.mxu0 0
    %389 = vmatpush.bf16.msra.mxu0 0
    %390 = vmatpush.bf16.msra.mxu0 0
    %391 = vmatpush.bf16.msra.mxu0 0
    %392 = vmatpush.bf16.msra.mxu0 %v371
    %393 = vmatpush.bf16.msra.mxu0 %v370
    %394 = vmatmul.bf16.gmra.mxu0 %v375
    %v395 = vpop.f32.mrf.mxu0
    %v396 = vadd.f32 0.0, %v395
    %v397 = vpop.f32.mrf.mxu0
    %v398 = vadd.f32 0.0, %v397
    %399 = vmatmul.bf16.gmra.mxu0 %v378
    %v400 = vpop.f32.mrf.mxu0
    %v401 = vadd.f32 0.0, %v400
    %v402 = vpop.f32.mrf.mxu0
    %v403 = vadd.f32 0.0, %v402
    %404 = vmatmul.bf16.gmra.mxu0 %v381
    %v405 = vpop.f32.mrf.mxu0
    %v406 = vadd.f32 0.0, %v405
    %v407 = vpop.f32.mrf.mxu0
    %v408 = vadd.f32 0.0, %v407
    %409 = vmatmul.bf16.gmra.mxu0 %v384
    %v410 = vpop.f32.mrf.mxu0
    %v411 = vadd.f32 0.0, %v410
    %v412 = vpop.f32.mrf.mxu0
    %v413 = vadd.f32 0.0, %v412
    %414 = vdwg.mxu0
    %v415 = vld [vmem:[%s7] sm:$0x1]
    %v417 = vperm.slane %v415, 0
    %v419 = vmul.f32 %v396, %v417
    %v420 = vmul.f32 %v398, %v417
    %v421 = vmul.f32 %v401, %v417
    %v422 = vmul.f32 %v403, %v417
    %v423 = vmul.f32 %v406, %v417
    %v424 = vmul.f32 %v408, %v417
    %v425 = vmul.f32 %v411, %v417
    %v426 = vmul.f32 %v413, %v417
    %v427 = vsel %vm157, %v419, 0.0
    %428 = vadd.xlane.f32.xlu0 %v427
    %v429 = vpop.xlane.xlu0 %428
    %v430 = vsel %vm157, %v420, 0.0
    %431 = vadd.xlane.f32.xlu0 %v430
    %v432 = vpop.xlane.xlu0 %431
    %v433 = vsel %vm157, %v421, 0.0
    %434 = vadd.xlane.f32.xlu0 %v433
    %v435 = vpop.xlane.xlu0 %434
    %v436 = vsel %vm157, %v422, 0.0
    %437 = vadd.xlane.f32.xlu0 %v436
    %v438 = vpop.xlane.xlu0 %437
    %v439 = vsel %vm157, %v423, 0.0
    %440 = vadd.xlane.f32.xlu0 %v439
    %v441 = vpop.xlane.xlu0 %440
    %v442 = vsel %vm157, %v424, 0.0
    %443 = vadd.xlane.f32.xlu0 %v442
    %v444 = vpop.xlane.xlu0 %443
    %v445 = vsel %vm157, %v425, 0.0
    %446 = vadd.xlane.f32.xlu0 %v445
    %v447 = vpop.xlane.xlu0 %446
    %v448 = vsel %vm157, %v426, 0.0
    %449 = vadd.xlane.f32.xlu0 %v448
    %v450 = vpop.xlane.xlu0 %449
    %v451 = vld [vmem:[%s8] sm:$0x1]
    %v453 = vperm.slane %v451, 0
    %v455 = vmul.f32 %v396, %v453
    %v456 = vmul.f32 %v398, %v453
    %v457 = vmul.f32 %v401, %v453
    %v458 = vmul.f32 %v403, %v453
    %v459 = vmul.f32 %v406, %v453
    %v460 = vmul.f32 %v408, %v453
    %v461 = vmul.f32 %v411, %v453
    %v462 = vmul.f32 %v413, %v453
    %v463 = vsel %vm157, %v455, 0.0
    %464 = vadd.xlane.f32.xlu0 %v463
    %v465 = vpop.xlane.xlu0 %464
    %v466 = vsel %vm157, %v456, 0.0
    %467 = vadd.xlane.f32.xlu0 %v466
    %v468 = vpop.xlane.xlu0 %467
    %v469 = vsel %vm157, %v457, 0.0
    %470 = vadd.xlane.f32.xlu0 %v469
    %v471 = vpop.xlane.xlu0 %470
    %v472 = vsel %vm157, %v458, 0.0
    %473 = vadd.xlane.f32.xlu0 %v472
    %v474 = vpop.xlane.xlu0 %473
    %v475 = vsel %vm157, %v459, 0.0
    %476 = vadd.xlane.f32.xlu0 %v475
    %v477 = vpop.xlane.xlu0 %476
    %v478 = vsel %vm157, %v460, 0.0
    %479 = vadd.xlane.f32.xlu0 %v478
    %v480 = vpop.xlane.xlu0 %479
    %v481 = vsel %vm157, %v461, 0.0
    %482 = vadd.xlane.f32.xlu0 %v481
    %v483 = vpop.xlane.xlu0 %482
    %v484 = vsel %vm157, %v462, 0.0
    %485 = vadd.xlane.f32.xlu0 %v484
    %v486 = vpop.xlane.xlu0 %485
    %v495 = vlaneseq
    %v496 = vand.u32 %v495, 127
    %v497 = vperm.slane %v429, %v496
    %v498 = vperm.slane %v432, %v496
    %v499 = vperm.slane %v435, %v496
    %v500 = vperm.slane %v438, %v496
    %v501 = vperm.slane %v441, %v496
    %v502 = vperm.slane %v444, %v496
    %v503 = vperm.slane %v447, %v496
    %v504 = vperm.slane %v450, %v496
    %vm505 = vcmask 1042434
    %v506 = vsel %vm505, %v497, %v497
    %vm507 = vcmask 1043459
    %v508 = vsel %vm507, %v497, %v506
    %vm509 = vcmask 1044484
    %v510 = vsel %vm509, %v497, %v508
    %vm511 = vcmask 1045509
    %v512 = vsel %vm511, %v497, %v510
    %vm513 = vcmask 1046534
    %v514 = vsel %vm513, %v497, %v512
    %vm515 = vcmask 1047559
    %v516 = vsel %vm515, %v497, %v514
    %v517 = vsel %vm505, %v498, %v498
    %v518 = vsel %vm507, %v498, %v517
    %v519 = vsel %vm509, %v498, %v518
    %v520 = vsel %vm511, %v498, %v519
    %v521 = vsel %vm513, %v498, %v520
    %v522 = vsel %vm515, %v498, %v521
    %v523 = vsel %vm505, %v499, %v499
    %v524 = vsel %vm507, %v499, %v523
    %v525 = vsel %vm509, %v499, %v524
    %v526 = vsel %vm511, %v499, %v525
    %v527 = vsel %vm513, %v499, %v526
    %v528 = vsel %vm515, %v499, %v527
    %v529 = vsel %vm505, %v500, %v500
    %v530 = vsel %vm507, %v500, %v529
    %v531 = vsel %vm509, %v500, %v530
    %v532 = vsel %vm511, %v500, %v531
    %v533 = vsel %vm513, %v500, %v532
    %v534 = vsel %vm515, %v500, %v533
    %v535 = vsel %vm505, %v501, %v501
    %v536 = vsel %vm507, %v501, %v535
    %v537 = vsel %vm509, %v501, %v536
    %v538 = vsel %vm511, %v501, %v537
    %v539 = vsel %vm513, %v501, %v538
    %v540 = vsel %vm515, %v501, %v539
    %v541 = vsel %vm505, %v502, %v502
    %v542 = vsel %vm507, %v502, %v541
    %v543 = vsel %vm509, %v502, %v542
    %v544 = vsel %vm511, %v502, %v543
    %v545 = vsel %vm513, %v502, %v544
    %v546 = vsel %vm515, %v502, %v545
    %v547 = vsel %vm505, %v503, %v503
    %v548 = vsel %vm507, %v503, %v547
    %v549 = vsel %vm509, %v503, %v548
    %v550 = vsel %vm511, %v503, %v549
    %v551 = vsel %vm513, %v503, %v550
    %v552 = vsel %vm515, %v503, %v551
    %v553 = vsel %vm505, %v504, %v504
    %v554 = vsel %vm507, %v504, %v553
    %v555 = vsel %vm509, %v504, %v554
    %v556 = vsel %vm511, %v504, %v555
    %v557 = vsel %vm513, %v504, %v556
    %v558 = vsel %vm515, %v504, %v557
    %v567 = vadd.f32 %v465, %v516
    %v568 = vadd.f32 %v468, %v522
    %v569 = vadd.f32 %v471, %v528
    %v570 = vadd.f32 %v474, %v534
    %v571 = vadd.f32 %v477, %v540
    %v572 = vadd.f32 %v480, %v546
    %v573 = vadd.f32 %v483, %v552
    %v574 = vadd.f32 %v486, %v558
    %vm575 = vcmp.gt.f32.partialorder %v567, 0.0
    %vm576 = vcmp.gt.f32.partialorder %v568, 0.0
    %vm577 = vcmp.gt.f32.partialorder %v569, 0.0
    %vm578 = vcmp.gt.f32.partialorder %v570, 0.0
    %vm579 = vcmp.gt.f32.partialorder %v571, 0.0
    %vm580 = vcmp.gt.f32.partialorder %v572, 0.0
    %vm581 = vcmp.gt.f32.partialorder %v573, 0.0
    %vm582 = vcmp.gt.f32.partialorder %v574, 0.0
    %v583 = vmul.f32 %v567, 0.2
    %v584 = vmul.f32 %v568, 0.2
    %v585 = vmul.f32 %v569, 0.2
    %v586 = vmul.f32 %v570, 0.2
    %v587 = vmul.f32 %v571, 0.2
    %v588 = vmul.f32 %v572, 0.2
    %v589 = vmul.f32 %v573, 0.2
    %v590 = vmul.f32 %v574, 0.2
    %v591 = vsel %vm575, %v567, %v583
    %v592 = vsel %vm576, %v568, %v584
    %v593 = vsel %vm577, %v569, %v585
    %v594 = vsel %vm578, %v570, %v586
    %v595 = vsel %vm579, %v571, %v587
    %v596 = vsel %vm580, %v572, %v588
    %v597 = vsel %vm581, %v573, %v589
    %v598 = vsel %vm582, %v574, %v590
    %v599 = vadd.f32 %v591, %v353
    %v600 = vadd.f32 %v592, %v353
    %v601 = vadd.f32 %v593, %v353
    %v602 = vadd.f32 %v594, %v353
    %v603 = vadd.f32 %v595, %v353
    %v604 = vadd.f32 %v596, %v353
    %v605 = vadd.f32 %v597, %v353
    %v606 = vadd.f32 %v598, %v353
    %vm607 = vcmask 64512
    %v608 = vsel %vm607, %v599, -inf
    %609 = vmax.xlane.f32.xlu0 %v608
    %v610 = vpop.xlane.xlu0 %609
    %v611 = vsel %vm607, %v600, -inf
    %612 = vmax.xlane.f32.xlu0 %v611
    %v613 = vpop.xlane.xlu0 %612
    %v614 = vsel %vm607, %v601, -inf
    %615 = vmax.xlane.f32.xlu0 %v614
    %v616 = vpop.xlane.xlu0 %615
    %v617 = vsel %vm607, %v602, -inf
    %618 = vmax.xlane.f32.xlu0 %v617
    %v619 = vpop.xlane.xlu0 %618
    %v620 = vsel %vm607, %v603, -inf
    %621 = vmax.xlane.f32.xlu0 %v620
    %v622 = vpop.xlane.xlu0 %621
    %v623 = vsel %vm607, %v604, -inf
    %624 = vmax.xlane.f32.xlu0 %v623
    %v625 = vpop.xlane.xlu0 %624
    %v626 = vsel %vm607, %v605, -inf
    %627 = vmax.xlane.f32.xlu0 %v626
    %v628 = vpop.xlane.xlu0 %627
    %v629 = vsel %vm607, %v606, -inf
    %630 = vmax.xlane.f32.xlu0 %v629
    %v631 = vpop.xlane.xlu0 %630
    %v632 = vsub.f32 %v599, %v610
    %v633 = vsub.f32 %v600, %v613
    %v634 = vsub.f32 %v601, %v616
    %v635 = vsub.f32 %v602, %v619
    %v636 = vsub.f32 %v603, %v622
    %v637 = vsub.f32 %v604, %v625
    %v638 = vsub.f32 %v605, %v628
    %v639 = vsub.f32 %v606, %v631
    %v640 = vmul.f32 %v632, 1.442695
    %v641 = vpow.pop %v640
    %v642 = vmul.f32 %v633, 1.442695
    %v643 = vpow.pop %v642
    %v644 = vmul.f32 %v634, 1.442695
    %v645 = vpow.pop %v644
    %v646 = vmul.f32 %v635, 1.442695
    %v647 = vpow.pop %v646
    %v648 = vmul.f32 %v636, 1.442695
    %v649 = vpow.pop %v648
    %v650 = vmul.f32 %v637, 1.442695
    %v651 = vpow.pop %v650
    %v652 = vmul.f32 %v638, 1.442695
    %v653 = vpow.pop %v652
    %v654 = vmul.f32 %v639, 1.442695
    %v655 = vpow.pop %v654
    %v656 = vsel %vm607, %v641, 0.0
    %657 = vadd.xlane.f32.xlu0 %v656
    %v658 = vpop.xlane.xlu0 %657
    %v659 = vsel %vm607, %v643, 0.0
    %660 = vadd.xlane.f32.xlu0 %v659
    %v661 = vpop.xlane.xlu0 %660
    %v662 = vsel %vm607, %v645, 0.0
    %663 = vadd.xlane.f32.xlu0 %v662
    %v664 = vpop.xlane.xlu0 %663
    %v665 = vsel %vm607, %v647, 0.0
    %666 = vadd.xlane.f32.xlu0 %v665
    %v667 = vpop.xlane.xlu0 %666
    %v668 = vsel %vm607, %v649, 0.0
    %669 = vadd.xlane.f32.xlu0 %v668
    %v670 = vpop.xlane.xlu0 %669
    %v671 = vsel %vm607, %v651, 0.0
    %672 = vadd.xlane.f32.xlu0 %v671
    %v673 = vpop.xlane.xlu0 %672
    %v674 = vsel %vm607, %v653, 0.0
    %675 = vadd.xlane.f32.xlu0 %v674
    %v676 = vpop.xlane.xlu0 %675
    %v677 = vsel %vm607, %v655, 0.0
    %678 = vadd.xlane.f32.xlu0 %v677
    %v679 = vpop.xlane.xlu0 %678
    %v680 = vrcp.pop %v658
    %v681 = vrcp.pop %v661
    %v682 = vrcp.pop %v664
    %v683 = vrcp.pop %v667
    %v684 = vrcp.pop %v670
    %v685 = vrcp.pop %v673
    %v686 = vrcp.pop %v676
    %v687 = vrcp.pop %v679
    %v688 = vmul.f32 %v641, %v680
    %v689 = vmul.f32 %v643, %v681
    %v690 = vmul.f32 %v645, %v682
    %v691 = vmul.f32 %v647, %v683
    %v692 = vmul.f32 %v649, %v684
    %v693 = vmul.f32 %v651, %v685
    %v694 = vmul.f32 %v653, %v686
    %v695 = vmul.f32 %v655, %v687
    %v696 = vpack.c.bf16 %v688, %v688
    %v697 = vpack.c.bf16 %v689, %v689
    %v698 = vpack.c.bf16 %v690, %v690
    %v699 = vpack.c.bf16 %v691, %v691
    %v700 = vpack.c.bf16 %v692, %v692
    %v701 = vpack.c.bf16 %v693, %v693
    %v702 = vpack.c.bf16 %v694, %v694
    %v703 = vpack.c.bf16 %v695, %v695
    %v704 = vpack.c.bf16 %v396, %v396
    %v705 = vpack.c.bf16 %v398, %v398
    %v706 = vpack.c.bf16 %v401, %v401
    %v707 = vpack.c.bf16 %v403, %v403
    %v708 = vpack.c.bf16 %v406, %v406
    %v709 = vpack.c.bf16 %v408, %v408
    %v710 = vpack.c.bf16 %v411, %v411
    %v711 = vpack.c.bf16 %v413, %v413
    %v712 = vld [vmem:[%s9] sm:$0x1]
    %v714 = vperm.slane %v712, 0
    %v717 = vsel %vm607, %v696, 0
    %vm719 = vcmask 1043456
    %v721 = vsel %vm719, %v704, 0
    %723 = vmatpush.bf16.msra.mxu0 0
    %724 = vmatpush.bf16.msra.mxu0 0
    %725 = vmatpush.bf16.msra.mxu0 0
    %726 = vmatpush.bf16.msra.mxu0 0
    %727 = vmatpush.bf16.msra.mxu0 0
    %728 = vmatpush.bf16.msra.mxu0 0
    %729 = vmatpush.bf16.msra.mxu0 0
    %730 = vmatpush.bf16.msra.mxu0 %v721
    %731 = vmatmul.bf16.gmra.mxu0 %v717
    %v732 = vpop.f32.mrf.mxu0
    %v733 = vadd.f32 %v714, %v732
    %v734 = vpop.f32.mrf.mxu0
    %735 = vdwg.mxu0
    %v737 = vsel %vm607, %v697, 0
    %v740 = vsel %vm719, %v705, 0
    %742 = vmatpush.bf16.msra.mxu0 0
    %743 = vmatpush.bf16.msra.mxu0 0
    %744 = vmatpush.bf16.msra.mxu0 0
    %745 = vmatpush.bf16.msra.mxu0 0
    %746 = vmatpush.bf16.msra.mxu0 0
    %747 = vmatpush.bf16.msra.mxu0 0
    %748 = vmatpush.bf16.msra.mxu0 0
    %749 = vmatpush.bf16.msra.mxu0 %v740
    %750 = vmatmul.bf16.gmra.mxu0 %v737
    %v751 = vpop.f32.mrf.mxu0
    %v752 = vadd.f32 %v714, %v751
    %v753 = vpop.f32.mrf.mxu0
    %754 = vdwg.mxu0
    %v756 = vsel %vm607, %v698, 0
    %v759 = vsel %vm719, %v706, 0
    %761 = vmatpush.bf16.msra.mxu0 0
    %762 = vmatpush.bf16.msra.mxu0 0
    %763 = vmatpush.bf16.msra.mxu0 0
    %764 = vmatpush.bf16.msra.mxu0 0
    %765 = vmatpush.bf16.msra.mxu0 0
    %766 = vmatpush.bf16.msra.mxu0 0
    %767 = vmatpush.bf16.msra.mxu0 0
    %768 = vmatpush.bf16.msra.mxu0 %v759
    %769 = vmatmul.bf16.gmra.mxu0 %v756
    %v770 = vpop.f32.mrf.mxu0
    %v771 = vadd.f32 %v714, %v770
    %v772 = vpop.f32.mrf.mxu0
    %773 = vdwg.mxu0
    %v775 = vsel %vm607, %v699, 0
    %v778 = vsel %vm719, %v707, 0
    %780 = vmatpush.bf16.msra.mxu0 0
    %781 = vmatpush.bf16.msra.mxu0 0
    %782 = vmatpush.bf16.msra.mxu0 0
    %783 = vmatpush.bf16.msra.mxu0 0
    %784 = vmatpush.bf16.msra.mxu0 0
    %785 = vmatpush.bf16.msra.mxu0 0
    %786 = vmatpush.bf16.msra.mxu0 0
    %787 = vmatpush.bf16.msra.mxu0 %v778
    %788 = vmatmul.bf16.gmra.mxu0 %v775
    %v789 = vpop.f32.mrf.mxu0
    %v790 = vadd.f32 %v714, %v789
    %v791 = vpop.f32.mrf.mxu0
    %792 = vdwg.mxu0
    %v794 = vsel %vm607, %v700, 0
    %v797 = vsel %vm719, %v708, 0
    %799 = vmatpush.bf16.msra.mxu0 0
    %800 = vmatpush.bf16.msra.mxu0 0
    %801 = vmatpush.bf16.msra.mxu0 0
    %802 = vmatpush.bf16.msra.mxu0 0
    %803 = vmatpush.bf16.msra.mxu0 0
    %804 = vmatpush.bf16.msra.mxu0 0
    %805 = vmatpush.bf16.msra.mxu0 0
    %806 = vmatpush.bf16.msra.mxu0 %v797
    %807 = vmatmul.bf16.gmra.mxu0 %v794
    %v808 = vpop.f32.mrf.mxu0
    %v809 = vadd.f32 %v714, %v808
    %v810 = vpop.f32.mrf.mxu0
    %811 = vdwg.mxu0
    %v813 = vsel %vm607, %v701, 0
    %v816 = vsel %vm719, %v709, 0
    %818 = vmatpush.bf16.msra.mxu0 0
    %819 = vmatpush.bf16.msra.mxu0 0
    %820 = vmatpush.bf16.msra.mxu0 0
    %821 = vmatpush.bf16.msra.mxu0 0
    %822 = vmatpush.bf16.msra.mxu0 0
    %823 = vmatpush.bf16.msra.mxu0 0
    %824 = vmatpush.bf16.msra.mxu0 0
    %825 = vmatpush.bf16.msra.mxu0 %v816
    %826 = vmatmul.bf16.gmra.mxu0 %v813
    %v827 = vpop.f32.mrf.mxu0
    %v828 = vadd.f32 %v714, %v827
    %v829 = vpop.f32.mrf.mxu0
    %830 = vdwg.mxu0
    %v832 = vsel %vm607, %v702, 0
    %v835 = vsel %vm719, %v710, 0
    %837 = vmatpush.bf16.msra.mxu0 0
    %838 = vmatpush.bf16.msra.mxu0 0
    %839 = vmatpush.bf16.msra.mxu0 0
    %840 = vmatpush.bf16.msra.mxu0 0
    %841 = vmatpush.bf16.msra.mxu0 0
    %842 = vmatpush.bf16.msra.mxu0 0
    %843 = vmatpush.bf16.msra.mxu0 0
    %844 = vmatpush.bf16.msra.mxu0 %v835
    %845 = vmatmul.bf16.gmra.mxu0 %v832
    %v846 = vpop.f32.mrf.mxu0
    %v847 = vadd.f32 %v714, %v846
    %v848 = vpop.f32.mrf.mxu0
    %849 = vdwg.mxu0
    %v851 = vsel %vm607, %v703, 0
    %v854 = vsel %vm719, %v711, 0
    %856 = vmatpush.bf16.msra.mxu0 0
    %857 = vmatpush.bf16.msra.mxu0 0
    %858 = vmatpush.bf16.msra.mxu0 0
    %859 = vmatpush.bf16.msra.mxu0 0
    %860 = vmatpush.bf16.msra.mxu0 0
    %861 = vmatpush.bf16.msra.mxu0 0
    %862 = vmatpush.bf16.msra.mxu0 0
    %863 = vmatpush.bf16.msra.mxu0 %v854
    %864 = vmatmul.bf16.gmra.mxu0 %v851
    %v865 = vpop.f32.mrf.mxu0
    %v866 = vadd.f32 %v714, %v865
    %v867 = vpop.f32.mrf.mxu0
    %868 = vdwg.mxu0
    %v869 = vmax.f32 %v733, 0.0
    %v870 = vmax.f32 %v752, 0.0
    %v871 = vmax.f32 %v771, 0.0
    %v872 = vmax.f32 %v790, 0.0
    %v873 = vmax.f32 %v809, 0.0
    %v874 = vmax.f32 %v828, 0.0
    %v875 = vmax.f32 %v847, 0.0
    %v876 = vmax.f32 %v866, 0.0
    %v877 = vpack.c.bf16 %v870, %v869
    %v878 = vpack.c.bf16 %v872, %v871
    %v879 = vpack.c.bf16 %v874, %v873
    %v880 = vpack.c.bf16 %v876, %v875
    %s881 = scalar_lea.vmem %s6, 16
    %v882 = vld [vmem:[%s881] sm:$0xf]
    %v883 = vld [vmem:[%s881 + $0x4] sm:$0xf]
    %v884 = vld [vmem:[%s881 + $0x8] sm:$0xf]
    %v885 = vld [vmem:[%s881 + $0xc] sm:$0xf]
    %v890 = vunpack.c.l.b16 %v882
    %v891 = vunpack.c.l.b16 %v883
    %v892 = vunpack.c.l.b16 %v884
    %v893 = vunpack.c.l.b16 %v885
    %v894 = vpack.c.b16 %v891, %v890
    %v895 = vpack.c.b16 %v893, %v892
    %v899 = vsel %vm157, %v877, 0
    %v902 = vsel %vm157, %v878, 0
    %v905 = vsel %vm157, %v879, 0
    %v908 = vsel %vm157, %v880, 0
    %910 = vmatpush.bf16.msra.mxu0 0
    %911 = vmatpush.bf16.msra.mxu0 0
    %912 = vmatpush.bf16.msra.mxu0 0
    %913 = vmatpush.bf16.msra.mxu0 0
    %914 = vmatpush.bf16.msra.mxu0 0
    %915 = vmatpush.bf16.msra.mxu0 0
    %916 = vmatpush.bf16.msra.mxu0 %v895
    %917 = vmatpush.bf16.msra.mxu0 %v894
    %918 = vmatmul.bf16.gmra.mxu0 %v899
    %v919 = vpop.f32.mrf.mxu0
    %v920 = vadd.f32 0.0, %v919
    %v921 = vpop.f32.mrf.mxu0
    %v922 = vadd.f32 0.0, %v921
    %923 = vmatmul.bf16.gmra.mxu0 %v902
    %v924 = vpop.f32.mrf.mxu0
    %v925 = vadd.f32 0.0, %v924
    %v926 = vpop.f32.mrf.mxu0
    %v927 = vadd.f32 0.0, %v926
    %928 = vmatmul.bf16.gmra.mxu0 %v905
    %v929 = vpop.f32.mrf.mxu0
    %v930 = vadd.f32 0.0, %v929
    %v931 = vpop.f32.mrf.mxu0
    %v932 = vadd.f32 0.0, %v931
    %933 = vmatmul.bf16.gmra.mxu0 %v908
    %v934 = vpop.f32.mrf.mxu0
    %v935 = vadd.f32 0.0, %v934
    %v936 = vpop.f32.mrf.mxu0
    %v937 = vadd.f32 0.0, %v936
    %938 = vdwg.mxu0
    %s939 = scalar_lea.vmem %s7, 1
    %v940 = vld [vmem:[%s939] sm:$0x1]
    %v942 = vperm.slane %v940, 0
    %v944 = vmul.f32 %v920, %v942
    %v945 = vmul.f32 %v922, %v942
    %v946 = vmul.f32 %v925, %v942
    %v947 = vmul.f32 %v927, %v942
    %v948 = vmul.f32 %v930, %v942
    %v949 = vmul.f32 %v932, %v942
    %v950 = vmul.f32 %v935, %v942
    %v951 = vmul.f32 %v937, %v942
    %v952 = vsel %vm157, %v944, 0.0
    %953 = vadd.xlane.f32.xlu0 %v952
    %v954 = vpop.xlane.xlu0 %953
    %v955 = vsel %vm157, %v945, 0.0
    %956 = vadd.xlane.f32.xlu0 %v955
    %v957 = vpop.xlane.xlu0 %956
    %v958 = vsel %vm157, %v946, 0.0
    %959 = vadd.xlane.f32.xlu0 %v958
    %v960 = vpop.xlane.xlu0 %959
    %v961 = vsel %vm157, %v947, 0.0
    %962 = vadd.xlane.f32.xlu0 %v961
    %v963 = vpop.xlane.xlu0 %962
    %v964 = vsel %vm157, %v948, 0.0
    %965 = vadd.xlane.f32.xlu0 %v964
    %v966 = vpop.xlane.xlu0 %965
    %v967 = vsel %vm157, %v949, 0.0
    %968 = vadd.xlane.f32.xlu0 %v967
    %v969 = vpop.xlane.xlu0 %968
    %v970 = vsel %vm157, %v950, 0.0
    %971 = vadd.xlane.f32.xlu0 %v970
    %v972 = vpop.xlane.xlu0 %971
    %v973 = vsel %vm157, %v951, 0.0
    %974 = vadd.xlane.f32.xlu0 %v973
    %v975 = vpop.xlane.xlu0 %974
    %s976 = scalar_lea.vmem %s8, 1
    %v977 = vld [vmem:[%s976] sm:$0x1]
    %v979 = vperm.slane %v977, 0
    %v981 = vmul.f32 %v920, %v979
    %v982 = vmul.f32 %v922, %v979
    %v983 = vmul.f32 %v925, %v979
    %v984 = vmul.f32 %v927, %v979
    %v985 = vmul.f32 %v930, %v979
    %v986 = vmul.f32 %v932, %v979
    %v987 = vmul.f32 %v935, %v979
    %v988 = vmul.f32 %v937, %v979
    %v989 = vsel %vm157, %v981, 0.0
    %990 = vadd.xlane.f32.xlu0 %v989
    %v991 = vpop.xlane.xlu0 %990
    %v992 = vsel %vm157, %v982, 0.0
    %993 = vadd.xlane.f32.xlu0 %v992
    %v994 = vpop.xlane.xlu0 %993
    %v995 = vsel %vm157, %v983, 0.0
    %996 = vadd.xlane.f32.xlu0 %v995
    %v997 = vpop.xlane.xlu0 %996
    %v998 = vsel %vm157, %v984, 0.0
    %999 = vadd.xlane.f32.xlu0 %v998
    %v1000 = vpop.xlane.xlu0 %999
    %v1001 = vsel %vm157, %v985, 0.0
    %1002 = vadd.xlane.f32.xlu0 %v1001
    %v1003 = vpop.xlane.xlu0 %1002
    %v1004 = vsel %vm157, %v986, 0.0
    %1005 = vadd.xlane.f32.xlu0 %v1004
    %v1006 = vpop.xlane.xlu0 %1005
    %v1007 = vsel %vm157, %v987, 0.0
    %1008 = vadd.xlane.f32.xlu0 %v1007
    %v1009 = vpop.xlane.xlu0 %1008
    %v1010 = vsel %vm157, %v988, 0.0
    %1011 = vadd.xlane.f32.xlu0 %v1010
    %v1012 = vpop.xlane.xlu0 %1011
    %v1021 = vperm.slane %v954, %v496
    %v1022 = vperm.slane %v957, %v496
    %v1023 = vperm.slane %v960, %v496
    %v1024 = vperm.slane %v963, %v496
    %v1025 = vperm.slane %v966, %v496
    %v1026 = vperm.slane %v969, %v496
    %v1027 = vperm.slane %v972, %v496
    %v1028 = vperm.slane %v975, %v496
    %v1029 = vsel %vm505, %v1021, %v1021
    %v1030 = vsel %vm507, %v1021, %v1029
    %v1031 = vsel %vm509, %v1021, %v1030
    %v1032 = vsel %vm511, %v1021, %v1031
    %v1033 = vsel %vm513, %v1021, %v1032
    %v1034 = vsel %vm515, %v1021, %v1033
    %v1035 = vsel %vm505, %v1022, %v1022
    %v1036 = vsel %vm507, %v1022, %v1035
    %v1037 = vsel %vm509, %v1022, %v1036
    %v1038 = vsel %vm511, %v1022, %v1037
    %v1039 = vsel %vm513, %v1022, %v1038
    %v1040 = vsel %vm515, %v1022, %v1039
    %v1041 = vsel %vm505, %v1023, %v1023
    %v1042 = vsel %vm507, %v1023, %v1041
    %v1043 = vsel %vm509, %v1023, %v1042
    %v1044 = vsel %vm511, %v1023, %v1043
    %v1045 = vsel %vm513, %v1023, %v1044
    %v1046 = vsel %vm515, %v1023, %v1045
    %v1047 = vsel %vm505, %v1024, %v1024
    %v1048 = vsel %vm507, %v1024, %v1047
    %v1049 = vsel %vm509, %v1024, %v1048
    %v1050 = vsel %vm511, %v1024, %v1049
    %v1051 = vsel %vm513, %v1024, %v1050
    %v1052 = vsel %vm515, %v1024, %v1051
    %v1053 = vsel %vm505, %v1025, %v1025
    %v1054 = vsel %vm507, %v1025, %v1053
    %v1055 = vsel %vm509, %v1025, %v1054
    %v1056 = vsel %vm511, %v1025, %v1055
    %v1057 = vsel %vm513, %v1025, %v1056
    %v1058 = vsel %vm515, %v1025, %v1057
    %v1059 = vsel %vm505, %v1026, %v1026
    %v1060 = vsel %vm507, %v1026, %v1059
    %v1061 = vsel %vm509, %v1026, %v1060
    %v1062 = vsel %vm511, %v1026, %v1061
    %v1063 = vsel %vm513, %v1026, %v1062
    %v1064 = vsel %vm515, %v1026, %v1063
    %v1065 = vsel %vm505, %v1027, %v1027
    %v1066 = vsel %vm507, %v1027, %v1065
    %v1067 = vsel %vm509, %v1027, %v1066
    %v1068 = vsel %vm511, %v1027, %v1067
    %v1069 = vsel %vm513, %v1027, %v1068
    %v1070 = vsel %vm515, %v1027, %v1069
    %v1071 = vsel %vm505, %v1028, %v1028
    %v1072 = vsel %vm507, %v1028, %v1071
    %v1073 = vsel %vm509, %v1028, %v1072
    %v1074 = vsel %vm511, %v1028, %v1073
    %v1075 = vsel %vm513, %v1028, %v1074
    %v1076 = vsel %vm515, %v1028, %v1075
    %v1085 = vadd.f32 %v991, %v1034
    %v1086 = vadd.f32 %v994, %v1040
    %v1087 = vadd.f32 %v997, %v1046
    %v1088 = vadd.f32 %v1000, %v1052
    %v1089 = vadd.f32 %v1003, %v1058
    %v1090 = vadd.f32 %v1006, %v1064
    %v1091 = vadd.f32 %v1009, %v1070
    %v1092 = vadd.f32 %v1012, %v1076
    %vm1093 = vcmp.gt.f32.partialorder %v1085, 0.0
    %vm1094 = vcmp.gt.f32.partialorder %v1086, 0.0
    %vm1095 = vcmp.gt.f32.partialorder %v1087, 0.0
    %vm1096 = vcmp.gt.f32.partialorder %v1088, 0.0
    %vm1097 = vcmp.gt.f32.partialorder %v1089, 0.0
    %vm1098 = vcmp.gt.f32.partialorder %v1090, 0.0
    %vm1099 = vcmp.gt.f32.partialorder %v1091, 0.0
    %vm1100 = vcmp.gt.f32.partialorder %v1092, 0.0
    %v1101 = vmul.f32 %v1085, 0.2
    %v1102 = vmul.f32 %v1086, 0.2
    %v1103 = vmul.f32 %v1087, 0.2
    %v1104 = vmul.f32 %v1088, 0.2
    %v1105 = vmul.f32 %v1089, 0.2
    %v1106 = vmul.f32 %v1090, 0.2
    %v1107 = vmul.f32 %v1091, 0.2
    %v1108 = vmul.f32 %v1092, 0.2
    %v1109 = vsel %vm1093, %v1085, %v1101
    %v1110 = vsel %vm1094, %v1086, %v1102
    %v1111 = vsel %vm1095, %v1087, %v1103
    %v1112 = vsel %vm1096, %v1088, %v1104
    %v1113 = vsel %vm1097, %v1089, %v1105
    %v1114 = vsel %vm1098, %v1090, %v1106
    %v1115 = vsel %vm1099, %v1091, %v1107
    %v1116 = vsel %vm1100, %v1092, %v1108
    %v1117 = vadd.f32 %v1109, %v353
    %v1118 = vadd.f32 %v1110, %v353
    %v1119 = vadd.f32 %v1111, %v353
    %v1120 = vadd.f32 %v1112, %v353
    %v1121 = vadd.f32 %v1113, %v353
    %v1122 = vadd.f32 %v1114, %v353
    %v1123 = vadd.f32 %v1115, %v353
    %v1124 = vadd.f32 %v1116, %v353
    %v1125 = vsel %vm607, %v1117, -inf
    %1126 = vmax.xlane.f32.xlu0 %v1125
    %v1127 = vpop.xlane.xlu0 %1126
    %v1128 = vsel %vm607, %v1118, -inf
    %1129 = vmax.xlane.f32.xlu0 %v1128
    %v1130 = vpop.xlane.xlu0 %1129
    %v1131 = vsel %vm607, %v1119, -inf
    %1132 = vmax.xlane.f32.xlu0 %v1131
    %v1133 = vpop.xlane.xlu0 %1132
    %v1134 = vsel %vm607, %v1120, -inf
    %1135 = vmax.xlane.f32.xlu0 %v1134
    %v1136 = vpop.xlane.xlu0 %1135
    %v1137 = vsel %vm607, %v1121, -inf
    %1138 = vmax.xlane.f32.xlu0 %v1137
    %v1139 = vpop.xlane.xlu0 %1138
    %v1140 = vsel %vm607, %v1122, -inf
    %1141 = vmax.xlane.f32.xlu0 %v1140
    %v1142 = vpop.xlane.xlu0 %1141
    %v1143 = vsel %vm607, %v1123, -inf
    %1144 = vmax.xlane.f32.xlu0 %v1143
    %v1145 = vpop.xlane.xlu0 %1144
    %v1146 = vsel %vm607, %v1124, -inf
    %1147 = vmax.xlane.f32.xlu0 %v1146
    %v1148 = vpop.xlane.xlu0 %1147
    %v1149 = vsub.f32 %v1117, %v1127
    %v1150 = vsub.f32 %v1118, %v1130
    %v1151 = vsub.f32 %v1119, %v1133
    %v1152 = vsub.f32 %v1120, %v1136
    %v1153 = vsub.f32 %v1121, %v1139
    %v1154 = vsub.f32 %v1122, %v1142
    %v1155 = vsub.f32 %v1123, %v1145
    %v1156 = vsub.f32 %v1124, %v1148
    %v1157 = vmul.f32 %v1149, 1.442695
    %v1158 = vpow.pop %v1157
    %v1159 = vmul.f32 %v1150, 1.442695
    %v1160 = vpow.pop %v1159
    %v1161 = vmul.f32 %v1151, 1.442695
    %v1162 = vpow.pop %v1161
    %v1163 = vmul.f32 %v1152, 1.442695
    %v1164 = vpow.pop %v1163
    %v1165 = vmul.f32 %v1153, 1.442695
    %v1166 = vpow.pop %v1165
    %v1167 = vmul.f32 %v1154, 1.442695
    %v1168 = vpow.pop %v1167
    %v1169 = vmul.f32 %v1155, 1.442695
    %v1170 = vpow.pop %v1169
    %v1171 = vmul.f32 %v1156, 1.442695
    %v1172 = vpow.pop %v1171
    %v1173 = vsel %vm607, %v1158, 0.0
    %1174 = vadd.xlane.f32.xlu0 %v1173
    %v1175 = vpop.xlane.xlu0 %1174
    %v1176 = vsel %vm607, %v1160, 0.0
    %1177 = vadd.xlane.f32.xlu0 %v1176
    %v1178 = vpop.xlane.xlu0 %1177
    %v1179 = vsel %vm607, %v1162, 0.0
    %1180 = vadd.xlane.f32.xlu0 %v1179
    %v1181 = vpop.xlane.xlu0 %1180
    %v1182 = vsel %vm607, %v1164, 0.0
    %1183 = vadd.xlane.f32.xlu0 %v1182
    %v1184 = vpop.xlane.xlu0 %1183
    %v1185 = vsel %vm607, %v1166, 0.0
    %1186 = vadd.xlane.f32.xlu0 %v1185
    %v1187 = vpop.xlane.xlu0 %1186
    %v1188 = vsel %vm607, %v1168, 0.0
    %1189 = vadd.xlane.f32.xlu0 %v1188
    %v1190 = vpop.xlane.xlu0 %1189
    %v1191 = vsel %vm607, %v1170, 0.0
    %1192 = vadd.xlane.f32.xlu0 %v1191
    %v1193 = vpop.xlane.xlu0 %1192
    %v1194 = vsel %vm607, %v1172, 0.0
    %1195 = vadd.xlane.f32.xlu0 %v1194
    %v1196 = vpop.xlane.xlu0 %1195
    %v1197 = vrcp.pop %v1175
    %v1198 = vrcp.pop %v1178
    %v1199 = vrcp.pop %v1181
    %v1200 = vrcp.pop %v1184
    %v1201 = vrcp.pop %v1187
    %v1202 = vrcp.pop %v1190
    %v1203 = vrcp.pop %v1193
    %v1204 = vrcp.pop %v1196
    %v1205 = vmul.f32 %v1158, %v1197
    %v1206 = vmul.f32 %v1160, %v1198
    %v1207 = vmul.f32 %v1162, %v1199
    %v1208 = vmul.f32 %v1164, %v1200
    %v1209 = vmul.f32 %v1166, %v1201
    %v1210 = vmul.f32 %v1168, %v1202
    %v1211 = vmul.f32 %v1170, %v1203
    %v1212 = vmul.f32 %v1172, %v1204
    %v1213 = vpack.c.bf16 %v1205, %v1205
    %v1214 = vpack.c.bf16 %v1206, %v1206
    %v1215 = vpack.c.bf16 %v1207, %v1207
    %v1216 = vpack.c.bf16 %v1208, %v1208
    %v1217 = vpack.c.bf16 %v1209, %v1209
    %v1218 = vpack.c.bf16 %v1210, %v1210
    %v1219 = vpack.c.bf16 %v1211, %v1211
    %v1220 = vpack.c.bf16 %v1212, %v1212
    %v1221 = vpack.c.bf16 %v920, %v920
    %v1222 = vpack.c.bf16 %v922, %v922
    %v1223 = vpack.c.bf16 %v925, %v925
    %v1224 = vpack.c.bf16 %v927, %v927
    %v1225 = vpack.c.bf16 %v930, %v930
    %v1226 = vpack.c.bf16 %v932, %v932
    %v1227 = vpack.c.bf16 %v935, %v935
    %v1228 = vpack.c.bf16 %v937, %v937
    %s1229 = scalar_lea.vmem %s9, 1
    %v1230 = vld [vmem:[%s1229] sm:$0x1]
    %v1232 = vperm.slane %v1230, 0
    %v1235 = vsel %vm607, %v1213, 0
    %v1238 = vsel %vm719, %v1221, 0
    %1240 = vmatpush.bf16.msra.mxu0 0
    %1241 = vmatpush.bf16.msra.mxu0 0
    %1242 = vmatpush.bf16.msra.mxu0 0
    %1243 = vmatpush.bf16.msra.mxu0 0
    %1244 = vmatpush.bf16.msra.mxu0 0
    %1245 = vmatpush.bf16.msra.mxu0 0
    %1246 = vmatpush.bf16.msra.mxu0 0
    %1247 = vmatpush.bf16.msra.mxu0 %v1238
    %1248 = vmatmul.bf16.gmra.mxu0 %v1235
    %v1249 = vpop.f32.mrf.mxu0
    %v1250 = vadd.f32 %v1232, %v1249
    %v1251 = vpop.f32.mrf.mxu0
    %1252 = vdwg.mxu0
    %v1254 = vsel %vm607, %v1214, 0
    %v1257 = vsel %vm719, %v1222, 0
    %1259 = vmatpush.bf16.msra.mxu0 0
    %1260 = vmatpush.bf16.msra.mxu0 0
    %1261 = vmatpush.bf16.msra.mxu0 0
    %1262 = vmatpush.bf16.msra.mxu0 0
    %1263 = vmatpush.bf16.msra.mxu0 0
    %1264 = vmatpush.bf16.msra.mxu0 0
    %1265 = vmatpush.bf16.msra.mxu0 0
    %1266 = vmatpush.bf16.msra.mxu0 %v1257
    %1267 = vmatmul.bf16.gmra.mxu0 %v1254
    %v1268 = vpop.f32.mrf.mxu0
    %v1269 = vadd.f32 %v1232, %v1268
    %v1270 = vpop.f32.mrf.mxu0
    %1271 = vdwg.mxu0
    %v1273 = vsel %vm607, %v1215, 0
    %v1276 = vsel %vm719, %v1223, 0
    %1278 = vmatpush.bf16.msra.mxu0 0
    %1279 = vmatpush.bf16.msra.mxu0 0
    %1280 = vmatpush.bf16.msra.mxu0 0
    %1281 = vmatpush.bf16.msra.mxu0 0
    %1282 = vmatpush.bf16.msra.mxu0 0
    %1283 = vmatpush.bf16.msra.mxu0 0
    %1284 = vmatpush.bf16.msra.mxu0 0
    %1285 = vmatpush.bf16.msra.mxu0 %v1276
    %1286 = vmatmul.bf16.gmra.mxu0 %v1273
    %v1287 = vpop.f32.mrf.mxu0
    %v1288 = vadd.f32 %v1232, %v1287
    %v1289 = vpop.f32.mrf.mxu0
    %1290 = vdwg.mxu0
    %v1292 = vsel %vm607, %v1216, 0
    %v1295 = vsel %vm719, %v1224, 0
    %1297 = vmatpush.bf16.msra.mxu0 0
    %1298 = vmatpush.bf16.msra.mxu0 0
    %1299 = vmatpush.bf16.msra.mxu0 0
    %1300 = vmatpush.bf16.msra.mxu0 0
    %1301 = vmatpush.bf16.msra.mxu0 0
    %1302 = vmatpush.bf16.msra.mxu0 0
    %1303 = vmatpush.bf16.msra.mxu0 0
    %1304 = vmatpush.bf16.msra.mxu0 %v1295
    %1305 = vmatmul.bf16.gmra.mxu0 %v1292
    %v1306 = vpop.f32.mrf.mxu0
    %v1307 = vadd.f32 %v1232, %v1306
    %v1308 = vpop.f32.mrf.mxu0
    %1309 = vdwg.mxu0
    %v1311 = vsel %vm607, %v1217, 0
    %v1314 = vsel %vm719, %v1225, 0
    %1316 = vmatpush.bf16.msra.mxu0 0
    %1317 = vmatpush.bf16.msra.mxu0 0
    %1318 = vmatpush.bf16.msra.mxu0 0
    %1319 = vmatpush.bf16.msra.mxu0 0
    %1320 = vmatpush.bf16.msra.mxu0 0
    %1321 = vmatpush.bf16.msra.mxu0 0
    %1322 = vmatpush.bf16.msra.mxu0 0
    %1323 = vmatpush.bf16.msra.mxu0 %v1314
    %1324 = vmatmul.bf16.gmra.mxu0 %v1311
    %v1325 = vpop.f32.mrf.mxu0
    %v1326 = vadd.f32 %v1232, %v1325
    %v1327 = vpop.f32.mrf.mxu0
    %1328 = vdwg.mxu0
    %v1330 = vsel %vm607, %v1218, 0
    %v1333 = vsel %vm719, %v1226, 0
    %1335 = vmatpush.bf16.msra.mxu0 0
    %1336 = vmatpush.bf16.msra.mxu0 0
    %1337 = vmatpush.bf16.msra.mxu0 0
    %1338 = vmatpush.bf16.msra.mxu0 0
    %1339 = vmatpush.bf16.msra.mxu0 0
    %1340 = vmatpush.bf16.msra.mxu0 0
    %1341 = vmatpush.bf16.msra.mxu0 0
    %1342 = vmatpush.bf16.msra.mxu0 %v1333
    %1343 = vmatmul.bf16.gmra.mxu0 %v1330
    %v1344 = vpop.f32.mrf.mxu0
    %v1345 = vadd.f32 %v1232, %v1344
    %v1346 = vpop.f32.mrf.mxu0
    %1347 = vdwg.mxu0
    %v1349 = vsel %vm607, %v1219, 0
    %v1352 = vsel %vm719, %v1227, 0
    %1354 = vmatpush.bf16.msra.mxu0 0
    %1355 = vmatpush.bf16.msra.mxu0 0
    %1356 = vmatpush.bf16.msra.mxu0 0
    %1357 = vmatpush.bf16.msra.mxu0 0
    %1358 = vmatpush.bf16.msra.mxu0 0
    %1359 = vmatpush.bf16.msra.mxu0 0
    %1360 = vmatpush.bf16.msra.mxu0 0
    %1361 = vmatpush.bf16.msra.mxu0 %v1352
    %1362 = vmatmul.bf16.gmra.mxu0 %v1349
    %v1363 = vpop.f32.mrf.mxu0
    %v1364 = vadd.f32 %v1232, %v1363
    %v1365 = vpop.f32.mrf.mxu0
    %1366 = vdwg.mxu0
    %v1368 = vsel %vm607, %v1220, 0
    %v1371 = vsel %vm719, %v1228, 0
    %1373 = vmatpush.bf16.msra.mxu0 0
    %1374 = vmatpush.bf16.msra.mxu0 0
    %1375 = vmatpush.bf16.msra.mxu0 0
    %1376 = vmatpush.bf16.msra.mxu0 0
    %1377 = vmatpush.bf16.msra.mxu0 0
    %1378 = vmatpush.bf16.msra.mxu0 0
    %1379 = vmatpush.bf16.msra.mxu0 0
    %1380 = vmatpush.bf16.msra.mxu0 %v1371
    %1381 = vmatmul.bf16.gmra.mxu0 %v1368
    %v1382 = vpop.f32.mrf.mxu0
    %v1383 = vadd.f32 %v1232, %v1382
    %v1384 = vpop.f32.mrf.mxu0
    %1385 = vdwg.mxu0
    %1386 = vst.msk [vmem:[#allocation2] sm:$0xff] %vm157, %v1250
    %1387 = vst.msk [vmem:[#allocation2 + $0x8] sm:$0xff] %vm157, %v1269
    %1388 = vst.msk [vmem:[#allocation2 + $0x10] sm:$0xff] %vm157, %v1288
    %1389 = vst.msk [vmem:[#allocation2 + $0x18] sm:$0xff] %vm157, %v1307
    %1390 = vst.msk [vmem:[#allocation2 + $0x20] sm:$0xff] %vm157, %v1326
    %1391 = vst.msk [vmem:[#allocation2 + $0x28] sm:$0xff] %vm157, %v1345
    %1392 = vst.msk [vmem:[#allocation2 + $0x30] sm:$0xff] %vm157, %v1364
    %1393 = vst.msk [vmem:[#allocation2 + $0x38] sm:$0xff] %vm157, %v1383
    // Predicated region
    $region42: #{tpu_custom_call.1} parent=1 // pred_check
      _
    $region43: #{tpu_custom_call.1} parent=1 // pred_check_branch
      %1395 = sbr.rel (0) target = $region45
    $region44: #{tpu_custom_call.1} parent=1 // pred_region
      %1397 = vsyncadd [#allocation3], 0
      %s1398 = sshll.u32 [#allocation2], 4
      %s1399 = int_to_ptr.vmem [resolvable:$true] %s1398
      %s1400 = sshll.u32 %s10, 4
      %s1401 = int_to_ptr.hbm [resolvable:$true] %s1400
      %1406 = dma.vmem_to_hbm [thread:$0]  %s1399, 1024, %s1401, [#allocation3], 128, 128, 8
    $region45: #{tpu_custom_call.1} parent=1 // pred_fallthru
      _
    // Predicated region
    $region46: #{tpu_custom_call.1} parent=1 // pred_check
      _
    $region47: #{tpu_custom_call.1} parent=1 // pred_check_branch
      %1408 = sbr.rel (0) target = $region49
    $region48: #{tpu_custom_call.1} parent=1 // pred_region
      %1410 = dma.done [#allocation3], 1024
    $region49: #{tpu_custom_call.1} parent=1 // pred_fallthru
      _
    %1411 = vsyncpa [#allocation3], 1

</llo_original>
